<compile_context>
chip_gen: v6e
topology: v6e:2x2x1
jax: 0.10.0
libtpu: 0.0.40
codegen_flags: <defaults>
</compile_context>

<pallas_src>
import functools

import jax
import jax.numpy as jnp
from jax.experimental import pallas as pl
from jax.experimental.pallas import tpu as pltpu


# ----------------------------------------------------------------------------
# Fused kernel: input projection (prologue) -> LSTM recurrence -> FC head
# (epilogue).  Single grid step; gates_x and h live only in VMEM scratch.
# ----------------------------------------------------------------------------
def _fused_decoder_kernel(
    x_ref,       # (T*Bp, E)   bf16, rows time-major (t*Bp + b)
    w_ih_ref,    # (E, 4Hp)    bf16, gate order (i, f, o, g)
    b_ih_ref,    # (1, 4Hp)    f32,  b_ih + b_hh folded, gate order (i, f, o, g)
    w_hh_ref,    # (Hp, 4Hp)   bf16
    w_fc_ref,    # (Hp, Vp)    bf16
    b_fc_ref,    # (1, Vp)     f32
    out_ref,     # (T*Bp, Vp)  f32, rows time-major
    gx_sc,       # VMEM scratch (T*Bp, 4Hp) f32
    h_sc,        # VMEM scratch (T*Bp, Hp)  f32
    *,
    hidden,      # Hp
    seq_len,     # T
    batch_p,     # Bp
):
    H, T, Bp = hidden, seq_len, batch_p

    # ---- Prologue (off the serial path): gates_x for ALL T*Bp rows at once.
    gx_sc[...] = (
        jnp.dot(x_ref[...], w_ih_ref[...], preferred_element_type=jnp.float32)
        + b_ih_ref[...]
    )

    # W_hh resident once for the whole recurrence.
    whh = w_hh_ref[...]                                    # (Hp, 4Hp) bf16

    def step(t, carry):
        h, c = carry
        row = pl.multiple_of(t * Bp, 8)                    # sublane-aligned
        gates = gx_sc[pl.ds(row, Bp), :] + jnp.dot(
            h.astype(jnp.bfloat16), whh, preferred_element_type=jnp.float32
        )
        # Gate order (i, f, o, g): one sigmoid over a contiguous 3H slab,
        # one tanh over the trailing H block.
        ifo = jax.nn.sigmoid(gates[:, : 3 * H])
        g_g = jnp.tanh(gates[:, 3 * H:])
        i_g = ifo[:, 0 * H:1 * H]
        f_g = ifo[:, 1 * H:2 * H]
        o_g = ifo[:, 2 * H:3 * H]
        c_new = f_g * c + i_g * g_g
        h_new = o_g * jnp.tanh(c_new)
        h_sc[pl.ds(row, Bp), :] = h_new
        return (h_new, c_new)

    h0 = jnp.zeros((Bp, H), jnp.float32)
    c0 = jnp.zeros((Bp, H), jnp.float32)
    jax.lax.fori_loop(0, T, step, (h0, c0), unroll=True)

    # ---- Epilogue: FC head on ALL T*Bp rows at once, straight from VMEM.
    logits = jnp.dot(
        h_sc[...].astype(jnp.bfloat16), w_fc_ref[...],
        preferred_element_type=jnp.float32,
    ) + b_fc_ref[...]
    out_ref[...] = logits.astype(out_ref.dtype)


def fused_decoder_pallas(x_flat, w_ih, b_lstm, w_hh, w_fc, b_fc, *, T, Bp, Hp, Vp):
    """x_flat: (T*Bp, E) bf16 -> logits (T*Bp, Vp) f32 (rows time-major)."""
    E = x_flat.shape[1]
    kernel = functools.partial(
        _fused_decoder_kernel, hidden=Hp, seq_len=T, batch_p=Bp
    )
    return pl.pallas_call(
        kernel,
        out_shape=jax.ShapeDtypeStruct((T * Bp, Vp), jnp.float32),
        grid_spec=pltpu.PrefetchScalarGridSpec(
            num_scalar_prefetch=0,
            grid=(1,),                                     # single fused step
            in_specs=[
                pl.BlockSpec((T * Bp, E), lambda i: (0, 0)),
                pl.BlockSpec((E, 4 * Hp), lambda i: (0, 0)),
                pl.BlockSpec((1, 4 * Hp), lambda i: (0, 0)),
                pl.BlockSpec((Hp, 4 * Hp), lambda i: (0, 0)),
                pl.BlockSpec((Hp, Vp), lambda i: (0, 0)),
                pl.BlockSpec((1, Vp), lambda i: (0, 0)),
            ],
            out_specs=pl.BlockSpec((T * Bp, Vp), lambda i: (0, 0)),
            scratch_shapes=[
                pltpu.VMEM((T * Bp, 4 * Hp), jnp.float32),  # gates_x
                pltpu.VMEM((T * Bp, Hp), jnp.float32),      # hidden states
            ],
        ),
        compiler_params=pltpu.CompilerParams(
            dimension_semantics=("arbitrary",),             # sequential recurrence
        ),
    )(x_flat, w_ih, b_lstm, w_hh, w_fc, b_fc)


# ----------------------------------------------------------------------------
# Parameter padding + gate reorder.
#   hidden -> multiple of 128 (per gate block), vocab -> multiple of 128,
#   PyTorch gate order (i, f, g, o) -> kernel order (i, f, o, g).
# ----------------------------------------------------------------------------
_GATE_PERM = jnp.asarray((0, 1, 3, 2))  # (i, f, g, o) -> (i, f, o, g)


def _round_up(x, m):
    return (x + m - 1) // m * m


def _pad_lstm_params(params, Hp, Vp):
    w_ih, w_hh, b_lstm = params["w_ih"], params["w_hh"], params["b_lstm"]
    w_fc, b_fc = params["w_fc"], params["b_fc"]
    H = w_hh.shape[0]
    V = w_fc.shape[1]
    dH, dV = Hp - H, Vp - V

    def reorder_pad_gate_cols(m):  # (..., 4H) -> (..., 4Hp), reorder + zero-pad per gate
        m4 = m.reshape(m.shape[:-1] + (4, H))
        m4 = jnp.take(m4, _GATE_PERM, axis=-2)
        m4 = jnp.pad(m4, [(0, 0)] * (m4.ndim - 1) + [(0, dH)])
        return m4.reshape(m.shape[:-1] + (4 * Hp,))

    w_ih_p = reorder_pad_gate_cols(w_ih)                              # (E, 4Hp)
    w_hh_p = jnp.pad(reorder_pad_gate_cols(w_hh), ((0, dH), (0, 0)))  # (Hp, 4Hp)
    b_p = reorder_pad_gate_cols(b_lstm)                               # (1, 4Hp)
    w_fc_p = jnp.pad(w_fc, ((0, dH), (0, dV)))                        # (Hp, Vp)
    b_fc_p = jnp.pad(b_fc, ((0, 0), (0, dV)))                         # (1, Vp)
    return w_ih_p, w_hh_p, b_p, w_fc_p, b_fc_p


# ----------------------------------------------------------------------------
# Full DecoderRNN.forward
# ----------------------------------------------------------------------------
def decoder_rnn_forward(features, captions, params):
    """features: (B, E) f32, captions: (B, L) i32 -> logits (B, L, V) f32."""
    emb_table = params["embedding"]                        # (V, E)
    captions = captions[:, :-1]                            # (B, L-1)
    embeddings = jnp.take(emb_table, captions, axis=0)     # (B, L-1, E)
    inputs = jnp.concatenate([features[:, None, :], embeddings], axis=1)  # (B,T,E)

    B, T, E = inputs.shape
    H = params["w_hh"].shape[0]
    V = params["w_fc"].shape[1]
    Bp = _round_up(B, 8)        # sublane quantum
    Hp = _round_up(H, 128)      # lane quantum (per gate block)
    Vp = _round_up(V, 128)

    w_ih_p, w_hh_p, b_lstm_p, w_fc_p, b_fc_p = _pad_lstm_params(params, Hp, Vp)

    # Time-major, batch-padded, flattened rows; bf16 MXU inputs (f32 accumulate
    # and f32 carries stay inside the kernel).
    x_tbe = jnp.transpose(inputs, (1, 0, 2))               # (T, B, E)
    x_tbe = jnp.pad(x_tbe, ((0, 0), (0, Bp - B), (0, 0)))  # (T, Bp, E)
    x_flat = x_tbe.reshape(T * Bp, E).astype(jnp.bfloat16)

    logits = fused_decoder_pallas(
        x_flat,
        w_ih_p.astype(jnp.bfloat16),
        b_lstm_p,
        w_hh_p.astype(jnp.bfloat16),
        w_fc_p.astype(jnp.bfloat16),
        b_fc_p,
        T=T, Bp=Bp, Hp=Hp, Vp=Vp,
    )                                                      # (T*Bp, Vp)

    logits = logits.reshape(T, Bp, Vp)
    # Tiny transpose at these sizes (done once in XLA); see TODO at top for the
    # production-size b-major FC-head variant that avoids it entirely.
    return jnp.transpose(logits, (1, 0, 2))[:B, :, :V]


# ----------------------------------------------------------------------------
# Params / reference / test
# ----------------------------------------------------------------------------
def init_params(key, embed_size, hidden_size, vocab_size):
    ks = jax.random.split(key, 7)
    s = 0.1
    return {
        "embedding": s * jax.random.normal(ks[0], (vocab_size, embed_size), jnp.float32),
        # gate order (i, f, g, o), right-multiply layout (PyTorch convention)
        "w_ih": s * jax.random.normal(ks[1], (embed_size, 4 * hidden_size), jnp.float32),
        "w_hh": s * jax.random.normal(ks[2], (hidden_size, 4 * hidden_size), jnp.float32),
        # b_ih + b_hh folded into one bias, kept 2D (1, 4H) for lane layout
        "b_lstm": s * jax.random.normal(ks[3], (1, 4 * hidden_size), jnp.float32),
        "w_fc": s * jax.random.normal(ks[4], (hidden_size, vocab_size), jnp.float32),
        "b_fc": s * jax.random.normal(ks[5], (1, vocab_size), jnp.float32),
    }


def _reference_forward(features, captions, params):
    """Pure-JAX f32 reference (lax.scan LSTM) for verification."""
    emb = jnp.take(params["embedding"], captions[:, :-1], axis=0)
    inputs = jnp.concatenate([features[:, None, :], emb], axis=1)
    x_tbe = jnp.transpose(inputs, (1, 0, 2))
    B = features.shape[0]
    H = params["w_hh"].shape[0]

    def step(carry, x):
        h, c = carry
        gates = x @ params["w_ih"] + h @ params["w_hh"] + params["b_lstm"]
        i = jax.nn.sigmoid(gates[:, 0 * H:1 * H])
        f = jax.nn.sigmoid(gates[:, 1 * H:2 * H])
        g = jnp.tanh(gates[:, 2 * H:3 * H])
        o = jax.nn.sigmoid(gates[:, 3 * H:4 * H])
        c = f * c + i * g
        h = o * jnp.tanh(c)
        return (h, c), h @ params["w_fc"] + params["b_fc"]

    (_, _), out = jax.lax.scan(step, (jnp.zeros((B, H)), jnp.zeros((B, H))), x_tbe)
    return jnp.transpose(out, (1, 0, 2))


if __name__ == "__main__":
    embed_size, hidden_size, vocab_size = 32, 32, 128
    batch, cap_len = 2, 9                     # T = 1 + (cap_len - 1) = 9

    key = jax.random.PRNGKey(0)
    k_p, k_f, k_c = jax.random.split(key, 3)
    params = init_params(k_p, embed_size, hidden_size, vocab_size)
    features = jax.random.normal(k_f, (batch, embed_size), jnp.float32)
    captions = jax.random.randint(k_c, (batch, cap_len), 0, vocab_size, jnp.int32)

    fwd = jax.jit(decoder_rnn_forward)
    out = jax.block_until_ready(fwd(features, captions, params))

    ref = jax.block_until_ready(_reference_forward(features, captions, params))
    assert out.shape == (batch, cap_len, vocab_size), out.shape
    # bf16 MXU inputs (f32 accumulate) -> loosened tolerance vs. the f32 reference.
    assert jnp.allclose(out, ref, rtol=2e-2, atol=2e-2), "mismatch vs reference"

    print("KERNEL_OK")
</pallas_src>

<mosaic_0001>
module attributes {stable_mosaic.version = 11 : i64} {
  func.func @_fused_decoder_kernel(%arg0: i32, %arg1: memref<72x32xbf16, #tpu.memory_space<vmem>>, %arg2: memref<32x512xbf16, #tpu.memory_space<vmem>>, %arg3: memref<1x512xf32, #tpu.memory_space<vmem>>, %arg4: memref<128x512xbf16, #tpu.memory_space<vmem>>, %arg5: memref<128x128xbf16, #tpu.memory_space<vmem>>, %arg6: memref<1x128xf32, #tpu.memory_space<vmem>>, %arg7: memref<72x128xf32, #tpu.memory_space<vmem>>, %arg8: memref<72x512xf32, #tpu.memory_space<vmem>>, %arg9: memref<72x128xf32, #tpu.memory_space<vmem>>) attributes {dimension_semantics = [#tpu.dimension_semantics<arbitrary>], iteration_bounds = array<i64: 1>, scalar_prefetch = 0 : i64, scratch_operands = 2 : i64, tpu.core_type = #tpu.core_type<tc>, window_params = [{pipeline_mode = #tpu.pipeline_mode<synchronous>, transform_indices = @transform_0, window_bounds = array<i64: 72, 32>}, {pipeline_mode = #tpu.pipeline_mode<synchronous>, transform_indices = @transform_1, window_bounds = array<i64: 32, 512>}, {pipeline_mode = #tpu.pipeline_mode<synchronous>, transform_indices = @transform_2, window_bounds = array<i64: 1, 512>}, {pipeline_mode = #tpu.pipeline_mode<synchronous>, transform_indices = @transform_3, window_bounds = array<i64: 128, 512>}, {pipeline_mode = #tpu.pipeline_mode<synchronous>, transform_indices = @transform_4, window_bounds = array<i64: 128, 128>}, {pipeline_mode = #tpu.pipeline_mode<synchronous>, transform_indices = @transform_5, window_bounds = array<i64: 1, 128>}, {pipeline_mode = #tpu.pipeline_mode<synchronous>, transform_indices = @transform_6, window_bounds = array<i64: 72, 128>}]} {
    %c0 = arith.constant 0 : index
    %c0_0 = arith.constant 0 : index
    %0 = vector.load %arg1[%c0, %c0_0] : memref<72x32xbf16, #tpu.memory_space<vmem>>, vector<72x32xbf16>
    %c0_1 = arith.constant 0 : index
    %c0_2 = arith.constant 0 : index
    %1 = vector.load %arg2[%c0_1, %c0_2] : memref<32x512xbf16, #tpu.memory_space<vmem>>, vector<32x512xbf16>
    %cst = arith.constant dense<0.000000e+00> : vector<72x512xf32>
    %2 = tpu.matmul %0, %1, %cst {dimension_numbers = #tpu.dot_dimension_numbers<[1], [0], [0], [1], [0, 0, 1, 1], [], []>} : vector<72x32xbf16>, vector<32x512xbf16>, vector<72x512xf32> -> vector<72x512xf32>
    %c0_3 = arith.constant 0 : index
    %c0_4 = arith.constant 0 : index
    %3 = vector.load %arg3[%c0_3, %c0_4] : memref<1x512xf32, #tpu.memory_space<vmem>>, vector<1x512xf32>
    %4 = vector.broadcast %3 : vector<1x512xf32> to vector<72x512xf32>
    %5 = arith.addf %2, %4 : vector<72x512xf32>
    %c0_5 = arith.constant 0 : index
    %c0_6 = arith.constant 0 : index
    %6 = vector.load %arg8[%c0_5, %c0_6] : memref<72x512xf32, #tpu.memory_space<vmem>>, vector<72x512xf32>
    tpu.vector_store %arg8[%c0_5, %c0_6], %5 {strides = array<i32>} : memref<72x512xf32, #tpu.memory_space<vmem>>, vector<72x512xf32>,
    %c0_7 = arith.constant 0 : index
    %c0_8 = arith.constant 0 : index
    %7 = vector.load %arg4[%c0_7, %c0_8] : memref<128x512xbf16, #tpu.memory_space<vmem>>, vector<128x512xbf16>
    %cst_9 = arith.constant 0.000000e+00 : f32
    %8 = vector.broadcast %cst_9 : f32 to vector<8x128xf32>
    %cst_10 = arith.constant 0.000000e+00 : f32
    %9 = vector.broadcast %cst_10 : f32 to vector<8x128xf32>
    %c0_i32 = arith.constant 0 : i32
    %c8_i32 = arith.constant 8 : i32
    %10 = arith.muli %c0_i32, %c8_i32 : i32
    %11 = tpu.assume_multiple %10, 8 : i32
    %12 = arith.index_cast %11 : i32 to index
    %c0_11 = arith.constant 0 : index
    %13 = vector.load %arg8[%12, %c0_11] : memref<72x512xf32, #tpu.memory_space<vmem>>, vector<8x512xf32>
    %14 = arith.truncf %8 : vector<8x128xf32> to vector<8x128xbf16>
    %cst_12 = arith.constant dense<0.000000e+00> : vector<8x512xf32>
    %15 = tpu.matmul %14, %7, %cst_12 {dimension_numbers = #tpu.dot_dimension_numbers<[1], [0], [0], [1], [0, 0, 1, 1], [], []>} : vector<8x128xbf16>, vector<128x512xbf16>, vector<8x512xf32> -> vector<8x512xf32>
    %16 = arith.addf %13, %15 : vector<8x512xf32>
    %17 = vector.extract_strided_slice %16 {offsets = [0, 0], sizes = [8, 384], strides = [1, 1]} : vector<8x512xf32> to vector<8x384xf32>
    %18 = arith.negf %17 : vector<8x384xf32>
    %19 = math.exp %18 : vector<8x384xf32>
    %cst_13 = arith.constant 1.000000e+00 : f32
    %20 = vector.broadcast %cst_13 : f32 to vector<8x384xf32>
    %21 = arith.addf %20, %19 : vector<8x384xf32>
    %22 = arith.divf %20, %21 : vector<8x384xf32>
    %23 = vector.extract_strided_slice %16 {offsets = [0, 384], sizes = [8, 128], strides = [1, 1]} : vector<8x512xf32> to vector<8x128xf32>
    %24 = math.tanh %23 : vector<8x128xf32>
    %25 = vector.extract_strided_slice %22 {offsets = [0, 0], sizes = [8, 128], strides = [1, 1]} : vector<8x384xf32> to vector<8x128xf32>
    %26 = vector.extract_strided_slice %22 {offsets = [0, 128], sizes = [8, 128], strides = [1, 1]} : vector<8x384xf32> to vector<8x128xf32>
    %27 = vector.extract_strided_slice %22 {offsets = [0, 256], sizes = [8, 128], strides = [1, 1]} : vector<8x384xf32> to vector<8x128xf32>
    %28 = arith.mulf %26, %9 : vector<8x128xf32>
    %29 = arith.mulf %25, %24 : vector<8x128xf32>
    %30 = arith.addf %28, %29 : vector<8x128xf32>
    %31 = math.tanh %30 : vector<8x128xf32>
    %32 = arith.mulf %27, %31 : vector<8x128xf32>
    %33 = arith.index_cast %11 : i32 to index
    %c0_14 = arith.constant 0 : index
    %34 = vector.load %arg9[%33, %c0_14] : memref<72x128xf32, #tpu.memory_space<vmem>>, vector<8x128xf32>
    tpu.vector_store %arg9[%33, %c0_14], %32 {strides = array<i32>} : memref<72x128xf32, #tpu.memory_space<vmem>>, vector<8x128xf32>,
    %c1_i32 = arith.constant 1 : i32
    %c8_i32_15 = arith.constant 8 : i32
    %35 = arith.muli %c1_i32, %c8_i32_15 : i32
    %36 = tpu.assume_multiple %35, 8 : i32
    %37 = arith.index_cast %36 : i32 to index
    %c0_16 = arith.constant 0 : index
    %38 = vector.load %arg8[%37, %c0_16] : memref<72x512xf32, #tpu.memory_space<vmem>>, vector<8x512xf32>
    %39 = arith.truncf %32 : vector<8x128xf32> to vector<8x128xbf16>
    %cst_17 = arith.constant dense<0.000000e+00> : vector<8x512xf32>
    %40 = tpu.matmul %39, %7, %cst_17 {dimension_numbers = #tpu.dot_dimension_numbers<[1], [0], [0], [1], [0, 0, 1, 1], [], []>} : vector<8x128xbf16>, vector<128x512xbf16>, vector<8x512xf32> -> vector<8x512xf32>
    %41 = arith.addf %38, %40 : vector<8x512xf32>
    %42 = vector.extract_strided_slice %41 {offsets = [0, 0], sizes = [8, 384], strides = [1, 1]} : vector<8x512xf32> to vector<8x384xf32>
    %43 = arith.negf %42 : vector<8x384xf32>
    %44 = math.exp %43 : vector<8x384xf32>
    %cst_18 = arith.constant 1.000000e+00 : f32
    %45 = vector.broadcast %cst_18 : f32 to vector<8x384xf32>
    %46 = arith.addf %45, %44 : vector<8x384xf32>
    %47 = arith.divf %45, %46 : vector<8x384xf32>
    %48 = vector.extract_strided_slice %41 {offsets = [0, 384], sizes = [8, 128], strides = [1, 1]} : vector<8x512xf32> to vector<8x128xf32>
    %49 = math.tanh %48 : vector<8x128xf32>
    %50 = vector.extract_strided_slice %47 {offsets = [0, 0], sizes = [8, 128], strides = [1, 1]} : vector<8x384xf32> to vector<8x128xf32>
    %51 = vector.extract_strided_slice %47 {offsets = [0, 128], sizes = [8, 128], strides = [1, 1]} : vector<8x384xf32> to vector<8x128xf32>
    %52 = vector.extract_strided_slice %47 {offsets = [0, 256], sizes = [8, 128], strides = [1, 1]} : vector<8x384xf32> to vector<8x128xf32>
    %53 = arith.mulf %51, %30 : vector<8x128xf32>
    %54 = arith.mulf %50, %49 : vector<8x128xf32>
    %55 = arith.addf %53, %54 : vector<8x128xf32>
    %56 = math.tanh %55 : vector<8x128xf32>
    %57 = arith.mulf %52, %56 : vector<8x128xf32>
    %58 = arith.index_cast %36 : i32 to index
    %c0_19 = arith.constant 0 : index
    %59 = vector.load %arg9[%58, %c0_19] : memref<72x128xf32, #tpu.memory_space<vmem>>, vector<8x128xf32>
    tpu.vector_store %arg9[%58, %c0_19], %57 {strides = array<i32>} : memref<72x128xf32, #tpu.memory_space<vmem>>, vector<8x128xf32>,
    %c2_i32 = arith.constant 2 : i32
    %c8_i32_20 = arith.constant 8 : i32
    %60 = arith.muli %c2_i32, %c8_i32_20 : i32
    %61 = tpu.assume_multiple %60, 8 : i32
    %62 = arith.index_cast %61 : i32 to index
    %c0_21 = arith.constant 0 : index
    %63 = vector.load %arg8[%62, %c0_21] : memref<72x512xf32, #tpu.memory_space<vmem>>, vector<8x512xf32>
    %64 = arith.truncf %57 : vector<8x128xf32> to vector<8x128xbf16>
    %cst_22 = arith.constant dense<0.000000e+00> : vector<8x512xf32>
    %65 = tpu.matmul %64, %7, %cst_22 {dimension_numbers = #tpu.dot_dimension_numbers<[1], [0], [0], [1], [0, 0, 1, 1], [], []>} : vector<8x128xbf16>, vector<128x512xbf16>, vector<8x512xf32> -> vector<8x512xf32>
    %66 = arith.addf %63, %65 : vector<8x512xf32>
    %67 = vector.extract_strided_slice %66 {offsets = [0, 0], sizes = [8, 384], strides = [1, 1]} : vector<8x512xf32> to vector<8x384xf32>
    %68 = arith.negf %67 : vector<8x384xf32>
    %69 = math.exp %68 : vector<8x384xf32>
    %cst_23 = arith.constant 1.000000e+00 : f32
    %70 = vector.broadcast %cst_23 : f32 to vector<8x384xf32>
    %71 = arith.addf %70, %69 : vector<8x384xf32>
    %72 = arith.divf %70, %71 : vector<8x384xf32>
    %73 = vector.extract_strided_slice %66 {offsets = [0, 384], sizes = [8, 128], strides = [1, 1]} : vector<8x512xf32> to vector<8x128xf32>
    %74 = math.tanh %73 : vector<8x128xf32>
    %75 = vector.extract_strided_slice %72 {offsets = [0, 0], sizes = [8, 128], strides = [1, 1]} : vector<8x384xf32> to vector<8x128xf32>
    %76 = vector.extract_strided_slice %72 {offsets = [0, 128], sizes = [8, 128], strides = [1, 1]} : vector<8x384xf32> to vector<8x128xf32>
    %77 = vector.extract_strided_slice %72 {offsets = [0, 256], sizes = [8, 128], strides = [1, 1]} : vector<8x384xf32> to vector<8x128xf32>
    %78 = arith.mulf %76, %55 : vector<8x128xf32>
    %79 = arith.mulf %75, %74 : vector<8x128xf32>
    %80 = arith.addf %78, %79 : vector<8x128xf32>
    %81 = math.tanh %80 : vector<8x128xf32>
    %82 = arith.mulf %77, %81 : vector<8x128xf32>
    %83 = arith.index_cast %61 : i32 to index
    %c0_24 = arith.constant 0 : index
    %84 = vector.load %arg9[%83, %c0_24] : memref<72x128xf32, #tpu.memory_space<vmem>>, vector<8x128xf32>
    tpu.vector_store %arg9[%83, %c0_24], %82 {strides = array<i32>} : memref<72x128xf32, #tpu.memory_space<vmem>>, vector<8x128xf32>,
    %c3_i32 = arith.constant 3 : i32
    %c8_i32_25 = arith.constant 8 : i32
    %85 = arith.muli %c3_i32, %c8_i32_25 : i32
    %86 = tpu.assume_multiple %85, 8 : i32
    %87 = arith.index_cast %86 : i32 to index
    %c0_26 = arith.constant 0 : index
    %88 = vector.load %arg8[%87, %c0_26] : memref<72x512xf32, #tpu.memory_space<vmem>>, vector<8x512xf32>
    %89 = arith.truncf %82 : vector<8x128xf32> to vector<8x128xbf16>
    %cst_27 = arith.constant dense<0.000000e+00> : vector<8x512xf32>
    %90 = tpu.matmul %89, %7, %cst_27 {dimension_numbers = #tpu.dot_dimension_numbers<[1], [0], [0], [1], [0, 0, 1, 1], [], []>} : vector<8x128xbf16>, vector<128x512xbf16>, vector<8x512xf32> -> vector<8x512xf32>
    %91 = arith.addf %88, %90 : vector<8x512xf32>
    %92 = vector.extract_strided_slice %91 {offsets = [0, 0], sizes = [8, 384], strides = [1, 1]} : vector<8x512xf32> to vector<8x384xf32>
    %93 = arith.negf %92 : vector<8x384xf32>
    %94 = math.exp %93 : vector<8x384xf32>
    %cst_28 = arith.constant 1.000000e+00 : f32
    %95 = vector.broadcast %cst_28 : f32 to vector<8x384xf32>
    %96 = arith.addf %95, %94 : vector<8x384xf32>
    %97 = arith.divf %95, %96 : vector<8x384xf32>
    %98 = vector.extract_strided_slice %91 {offsets = [0, 384], sizes = [8, 128], strides = [1, 1]} : vector<8x512xf32> to vector<8x128xf32>
    %99 = math.tanh %98 : vector<8x128xf32>
    %100 = vector.extract_strided_slice %97 {offsets = [0, 0], sizes = [8, 128], strides = [1, 1]} : vector<8x384xf32> to vector<8x128xf32>
    %101 = vector.extract_strided_slice %97 {offsets = [0, 128], sizes = [8, 128], strides = [1, 1]} : vector<8x384xf32> to vector<8x128xf32>
    %102 = vector.extract_strided_slice %97 {offsets = [0, 256], sizes = [8, 128], strides = [1, 1]} : vector<8x384xf32> to vector<8x128xf32>
    %103 = arith.mulf %101, %80 : vector<8x128xf32>
    %104 = arith.mulf %100, %99 : vector<8x128xf32>
    %105 = arith.addf %103, %104 : vector<8x128xf32>
    %106 = math.tanh %105 : vector<8x128xf32>
    %107 = arith.mulf %102, %106 : vector<8x128xf32>
    %108 = arith.index_cast %86 : i32 to index
    %c0_29 = arith.constant 0 : index
    %109 = vector.load %arg9[%108, %c0_29] : memref<72x128xf32, #tpu.memory_space<vmem>>, vector<8x128xf32>
    tpu.vector_store %arg9[%108, %c0_29], %107 {strides = array<i32>} : memref<72x128xf32, #tpu.memory_space<vmem>>, vector<8x128xf32>,
    %c4_i32 = arith.constant 4 : i32
    %c8_i32_30 = arith.constant 8 : i32
    %110 = arith.muli %c4_i32, %c8_i32_30 : i32
    %111 = tpu.assume_multiple %110, 8 : i32
    %112 = arith.index_cast %111 : i32 to index
    %c0_31 = arith.constant 0 : index
    %113 = vector.load %arg8[%112, %c0_31] : memref<72x512xf32, #tpu.memory_space<vmem>>, vector<8x512xf32>
    %114 = arith.truncf %107 : vector<8x128xf32> to vector<8x128xbf16>
    %cst_32 = arith.constant dense<0.000000e+00> : vector<8x512xf32>
    %115 = tpu.matmul %114, %7, %cst_32 {dimension_numbers = #tpu.dot_dimension_numbers<[1], [0], [0], [1], [0, 0, 1, 1], [], []>} : vector<8x128xbf16>, vector<128x512xbf16>, vector<8x512xf32> -> vector<8x512xf32>
    %116 = arith.addf %113, %115 : vector<8x512xf32>
    %117 = vector.extract_strided_slice %116 {offsets = [0, 0], sizes = [8, 384], strides = [1, 1]} : vector<8x512xf32> to vector<8x384xf32>
    %118 = arith.negf %117 : vector<8x384xf32>
    %119 = math.exp %118 : vector<8x384xf32>
    %cst_33 = arith.constant 1.000000e+00 : f32
    %120 = vector.broadcast %cst_33 : f32 to vector<8x384xf32>
    %121 = arith.addf %120, %119 : vector<8x384xf32>
    %122 = arith.divf %120, %121 : vector<8x384xf32>
    %123 = vector.extract_strided_slice %116 {offsets = [0, 384], sizes = [8, 128], strides = [1, 1]} : vector<8x512xf32> to vector<8x128xf32>
    %124 = math.tanh %123 : vector<8x128xf32>
    %125 = vector.extract_strided_slice %122 {offsets = [0, 0], sizes = [8, 128], strides = [1, 1]} : vector<8x384xf32> to vector<8x128xf32>
    %126 = vector.extract_strided_slice %122 {offsets = [0, 128], sizes = [8, 128], strides = [1, 1]} : vector<8x384xf32> to vector<8x128xf32>
    %127 = vector.extract_strided_slice %122 {offsets = [0, 256], sizes = [8, 128], strides = [1, 1]} : vector<8x384xf32> to vector<8x128xf32>
    %128 = arith.mulf %126, %105 : vector<8x128xf32>
    %129 = arith.mulf %125, %124 : vector<8x128xf32>
    %130 = arith.addf %128, %129 : vector<8x128xf32>
    %131 = math.tanh %130 : vector<8x128xf32>
    %132 = arith.mulf %127, %131 : vector<8x128xf32>
    %133 = arith.index_cast %111 : i32 to index
    %c0_34 = arith.constant 0 : index
    %134 = vector.load %arg9[%133, %c0_34] : memref<72x128xf32, #tpu.memory_space<vmem>>, vector<8x128xf32>
    tpu.vector_store %arg9[%133, %c0_34], %132 {strides = array<i32>} : memref<72x128xf32, #tpu.memory_space<vmem>>, vector<8x128xf32>,
    %c5_i32 = arith.constant 5 : i32
    %c8_i32_35 = arith.constant 8 : i32
    %135 = arith.muli %c5_i32, %c8_i32_35 : i32
    %136 = tpu.assume_multiple %135, 8 : i32
    %137 = arith.index_cast %136 : i32 to index
    %c0_36 = arith.constant 0 : index
    %138 = vector.load %arg8[%137, %c0_36] : memref<72x512xf32, #tpu.memory_space<vmem>>, vector<8x512xf32>
    %139 = arith.truncf %132 : vector<8x128xf32> to vector<8x128xbf16>
    %cst_37 = arith.constant dense<0.000000e+00> : vector<8x512xf32>
    %140 = tpu.matmul %139, %7, %cst_37 {dimension_numbers = #tpu.dot_dimension_numbers<[1], [0], [0], [1], [0, 0, 1, 1], [], []>} : vector<8x128xbf16>, vector<128x512xbf16>, vector<8x512xf32> -> vector<8x512xf32>
    %141 = arith.addf %138, %140 : vector<8x512xf32>
    %142 = vector.extract_strided_slice %141 {offsets = [0, 0], sizes = [8, 384], strides = [1, 1]} : vector<8x512xf32> to vector<8x384xf32>
    %143 = arith.negf %142 : vector<8x384xf32>
    %144 = math.exp %143 : vector<8x384xf32>
    %cst_38 = arith.constant 1.000000e+00 : f32
    %145 = vector.broadcast %cst_38 : f32 to vector<8x384xf32>
    %146 = arith.addf %145, %144 : vector<8x384xf32>
    %147 = arith.divf %145, %146 : vector<8x384xf32>
    %148 = vector.extract_strided_slice %141 {offsets = [0, 384], sizes = [8, 128], strides = [1, 1]} : vector<8x512xf32> to vector<8x128xf32>
    %149 = math.tanh %148 : vector<8x128xf32>
    %150 = vector.extract_strided_slice %147 {offsets = [0, 0], sizes = [8, 128], strides = [1, 1]} : vector<8x384xf32> to vector<8x128xf32>
    %151 = vector.extract_strided_slice %147 {offsets = [0, 128], sizes = [8, 128], strides = [1, 1]} : vector<8x384xf32> to vector<8x128xf32>
    %152 = vector.extract_strided_slice %147 {offsets = [0, 256], sizes = [8, 128], strides = [1, 1]} : vector<8x384xf32> to vector<8x128xf32>
    %153 = arith.mulf %151, %130 : vector<8x128xf32>
    %154 = arith.mulf %150, %149 : vector<8x128xf32>
    %155 = arith.addf %153, %154 : vector<8x128xf32>
    %156 = math.tanh %155 : vector<8x128xf32>
    %157 = arith.mulf %152, %156 : vector<8x128xf32>
    %158 = arith.index_cast %136 : i32 to index
    %c0_39 = arith.constant 0 : index
    %159 = vector.load %arg9[%158, %c0_39] : memref<72x128xf32, #tpu.memory_space<vmem>>, vector<8x128xf32>
    tpu.vector_store %arg9[%158, %c0_39], %157 {strides = array<i32>} : memref<72x128xf32, #tpu.memory_space<vmem>>, vector<8x128xf32>,
    %c6_i32 = arith.constant 6 : i32
    %c8_i32_40 = arith.constant 8 : i32
    %160 = arith.muli %c6_i32, %c8_i32_40 : i32
    %161 = tpu.assume_multiple %160, 8 : i32
    %162 = arith.index_cast %161 : i32 to index
    %c0_41 = arith.constant 0 : index
    %163 = vector.load %arg8[%162, %c0_41] : memref<72x512xf32, #tpu.memory_space<vmem>>, vector<8x512xf32>
    %164 = arith.truncf %157 : vector<8x128xf32> to vector<8x128xbf16>
    %cst_42 = arith.constant dense<0.000000e+00> : vector<8x512xf32>
    %165 = tpu.matmul %164, %7, %cst_42 {dimension_numbers = #tpu.dot_dimension_numbers<[1], [0], [0], [1], [0, 0, 1, 1], [], []>} : vector<8x128xbf16>, vector<128x512xbf16>, vector<8x512xf32> -> vector<8x512xf32>
    %166 = arith.addf %163, %165 : vector<8x512xf32>
    %167 = vector.extract_strided_slice %166 {offsets = [0, 0], sizes = [8, 384], strides = [1, 1]} : vector<8x512xf32> to vector<8x384xf32>
    %168 = arith.negf %167 : vector<8x384xf32>
    %169 = math.exp %168 : vector<8x384xf32>
    %cst_43 = arith.constant 1.000000e+00 : f32
    %170 = vector.broadcast %cst_43 : f32 to vector<8x384xf32>
    %171 = arith.addf %170, %169 : vector<8x384xf32>
    %172 = arith.divf %170, %171 : vector<8x384xf32>
    %173 = vector.extract_strided_slice %166 {offsets = [0, 384], sizes = [8, 128], strides = [1, 1]} : vector<8x512xf32> to vector<8x128xf32>
    %174 = math.tanh %173 : vector<8x128xf32>
    %175 = vector.extract_strided_slice %172 {offsets = [0, 0], sizes = [8, 128], strides = [1, 1]} : vector<8x384xf32> to vector<8x128xf32>
    %176 = vector.extract_strided_slice %172 {offsets = [0, 128], sizes = [8, 128], strides = [1, 1]} : vector<8x384xf32> to vector<8x128xf32>
    %177 = vector.extract_strided_slice %172 {offsets = [0, 256], sizes = [8, 128], strides = [1, 1]} : vector<8x384xf32> to vector<8x128xf32>
    %178 = arith.mulf %176, %155 : vector<8x128xf32>
    %179 = arith.mulf %175, %174 : vector<8x128xf32>
    %180 = arith.addf %178, %179 : vector<8x128xf32>
    %181 = math.tanh %180 : vector<8x128xf32>
    %182 = arith.mulf %177, %181 : vector<8x128xf32>
    %183 = arith.index_cast %161 : i32 to index
    %c0_44 = arith.constant 0 : index
    %184 = vector.load %arg9[%183, %c0_44] : memref<72x128xf32, #tpu.memory_space<vmem>>, vector<8x128xf32>
    tpu.vector_store %arg9[%183, %c0_44], %182 {strides = array<i32>} : memref<72x128xf32, #tpu.memory_space<vmem>>, vector<8x128xf32>,
    %c7_i32 = arith.constant 7 : i32
    %c8_i32_45 = arith.constant 8 : i32
    %185 = arith.muli %c7_i32, %c8_i32_45 : i32
    %186 = tpu.assume_multiple %185, 8 : i32
    %187 = arith.index_cast %186 : i32 to index
    %c0_46 = arith.constant 0 : index
    %188 = vector.load %arg8[%187, %c0_46] : memref<72x512xf32, #tpu.memory_space<vmem>>, vector<8x512xf32>
    %189 = arith.truncf %182 : vector<8x128xf32> to vector<8x128xbf16>
    %cst_47 = arith.constant dense<0.000000e+00> : vector<8x512xf32>
    %190 = tpu.matmul %189, %7, %cst_47 {dimension_numbers = #tpu.dot_dimension_numbers<[1], [0], [0], [1], [0, 0, 1, 1], [], []>} : vector<8x128xbf16>, vector<128x512xbf16>, vector<8x512xf32> -> vector<8x512xf32>
    %191 = arith.addf %188, %190 : vector<8x512xf32>
    %192 = vector.extract_strided_slice %191 {offsets = [0, 0], sizes = [8, 384], strides = [1, 1]} : vector<8x512xf32> to vector<8x384xf32>
    %193 = arith.negf %192 : vector<8x384xf32>
    %194 = math.exp %193 : vector<8x384xf32>
    %cst_48 = arith.constant 1.000000e+00 : f32
    %195 = vector.broadcast %cst_48 : f32 to vector<8x384xf32>
    %196 = arith.addf %195, %194 : vector<8x384xf32>
    %197 = arith.divf %195, %196 : vector<8x384xf32>
    %198 = vector.extract_strided_slice %191 {offsets = [0, 384], sizes = [8, 128], strides = [1, 1]} : vector<8x512xf32> to vector<8x128xf32>
    %199 = math.tanh %198 : vector<8x128xf32>
    %200 = vector.extract_strided_slice %197 {offsets = [0, 0], sizes = [8, 128], strides = [1, 1]} : vector<8x384xf32> to vector<8x128xf32>
    %201 = vector.extract_strided_slice %197 {offsets = [0, 128], sizes = [8, 128], strides = [1, 1]} : vector<8x384xf32> to vector<8x128xf32>
    %202 = vector.extract_strided_slice %197 {offsets = [0, 256], sizes = [8, 128], strides = [1, 1]} : vector<8x384xf32> to vector<8x128xf32>
    %203 = arith.mulf %201, %180 : vector<8x128xf32>
    %204 = arith.mulf %200, %199 : vector<8x128xf32>
    %205 = arith.addf %203, %204 : vector<8x128xf32>
    %206 = math.tanh %205 : vector<8x128xf32>
    %207 = arith.mulf %202, %206 : vector<8x128xf32>
    %208 = arith.index_cast %186 : i32 to index
    %c0_49 = arith.constant 0 : index
    %209 = vector.load %arg9[%208, %c0_49] : memref<72x128xf32, #tpu.memory_space<vmem>>, vector<8x128xf32>
    tpu.vector_store %arg9[%208, %c0_49], %207 {strides = array<i32>} : memref<72x128xf32, #tpu.memory_space<vmem>>, vector<8x128xf32>,
    %c8_i32_50 = arith.constant 8 : i32
    %c8_i32_51 = arith.constant 8 : i32
    %210 = arith.muli %c8_i32_50, %c8_i32_51 : i32
    %211 = tpu.assume_multiple %210, 8 : i32
    %212 = arith.index_cast %211 : i32 to index
    %c0_52 = arith.constant 0 : index
    %213 = vector.load %arg8[%212, %c0_52] : memref<72x512xf32, #tpu.memory_space<vmem>>, vector<8x512xf32>
    %214 = arith.truncf %207 : vector<8x128xf32> to vector<8x128xbf16>
    %cst_53 = arith.constant dense<0.000000e+00> : vector<8x512xf32>
    %215 = tpu.matmul %214, %7, %cst_53 {dimension_numbers = #tpu.dot_dimension_numbers<[1], [0], [0], [1], [0, 0, 1, 1], [], []>} : vector<8x128xbf16>, vector<128x512xbf16>, vector<8x512xf32> -> vector<8x512xf32>
    %216 = arith.addf %213, %215 : vector<8x512xf32>
    %217 = vector.extract_strided_slice %216 {offsets = [0, 0], sizes = [8, 384], strides = [1, 1]} : vector<8x512xf32> to vector<8x384xf32>
    %218 = arith.negf %217 : vector<8x384xf32>
    %219 = math.exp %218 : vector<8x384xf32>
    %cst_54 = arith.constant 1.000000e+00 : f32
    %220 = vector.broadcast %cst_54 : f32 to vector<8x384xf32>
    %221 = arith.addf %220, %219 : vector<8x384xf32>
    %222 = arith.divf %220, %221 : vector<8x384xf32>
    %223 = vector.extract_strided_slice %216 {offsets = [0, 384], sizes = [8, 128], strides = [1, 1]} : vector<8x512xf32> to vector<8x128xf32>
    %224 = math.tanh %223 : vector<8x128xf32>
    %225 = vector.extract_strided_slice %222 {offsets = [0, 0], sizes = [8, 128], strides = [1, 1]} : vector<8x384xf32> to vector<8x128xf32>
    %226 = vector.extract_strided_slice %222 {offsets = [0, 128], sizes = [8, 128], strides = [1, 1]} : vector<8x384xf32> to vector<8x128xf32>
    %227 = vector.extract_strided_slice %222 {offsets = [0, 256], sizes = [8, 128], strides = [1, 1]} : vector<8x384xf32> to vector<8x128xf32>
    %228 = arith.mulf %226, %205 : vector<8x128xf32>
    %229 = arith.mulf %225, %224 : vector<8x128xf32>
    %230 = arith.addf %228, %229 : vector<8x128xf32>
    %231 = math.tanh %230 : vector<8x128xf32>
    %232 = arith.mulf %227, %231 : vector<8x128xf32>
    %233 = arith.index_cast %211 : i32 to index
    %c0_55 = arith.constant 0 : index
    %234 = vector.load %arg9[%233, %c0_55] : memref<72x128xf32, #tpu.memory_space<vmem>>, vector<8x128xf32>
    tpu.vector_store %arg9[%233, %c0_55], %232 {strides = array<i32>} : memref<72x128xf32, #tpu.memory_space<vmem>>, vector<8x128xf32>,
    %c9_i32 = arith.constant 9 : i32
    %c0_56 = arith.constant 0 : index
    %c0_57 = arith.constant 0 : index
    %235 = vector.load %arg9[%c0_56, %c0_57] : memref<72x128xf32, #tpu.memory_space<vmem>>, vector<72x128xf32>
    %236 = arith.truncf %235 : vector<72x128xf32> to vector<72x128xbf16>
    %c0_58 = arith.constant 0 : index
    %c0_59 = arith.constant 0 : index
    %237 = vector.load %arg5[%c0_58, %c0_59] : memref<128x128xbf16, #tpu.memory_space<vmem>>, vector<128x128xbf16>
    %cst_60 = arith.constant dense<0.000000e+00> : vector<72x128xf32>
    %238 = tpu.matmul %236, %237, %cst_60 {dimension_numbers = #tpu.dot_dimension_numbers<[1], [0], [0], [1], [0, 0, 1, 1], [], []>} : vector<72x128xbf16>, vector<128x128xbf16>, vector<72x128xf32> -> vector<72x128xf32>
    %c0_61 = arith.constant 0 : index
    %c0_62 = arith.constant 0 : index
    %239 = vector.load %arg6[%c0_61, %c0_62] : memref<1x128xf32, #tpu.memory_space<vmem>>, vector<1x128xf32>
    %240 = vector.broadcast %239 : vector<1x128xf32> to vector<72x128xf32>
    %241 = arith.addf %238, %240 : vector<72x128xf32>
    %c0_63 = arith.constant 0 : index
    %c0_64 = arith.constant 0 : index
    %242 = vector.load %arg7[%c0_63, %c0_64] : memref<72x128xf32, #tpu.memory_space<vmem>>, vector<72x128xf32>
    tpu.vector_store %arg7[%c0_63, %c0_64], %241 {strides = array<i32>} : memref<72x128xf32, #tpu.memory_space<vmem>>, vector<72x128xf32>,
    return
  }
  func.func @transform_0(%arg0: i32) -> (i32, i32) {
    %c0_i32 = arith.constant 0 : i32
    %c0_i32_0 = arith.constant 0 : i32
    %c0_i32_1 = arith.constant 0 : i32
    return %c0_i32, %c0_i32_0 : i32, i32
  }
  func.func @transform_1(%arg0: i32) -> (i32, i32) {
    %c0_i32 = arith.constant 0 : i32
    %c0_i32_0 = arith.constant 0 : i32
    %c0_i32_1 = arith.constant 0 : i32
    return %c0_i32, %c0_i32_0 : i32, i32
  }
  func.func @transform_2(%arg0: i32) -> (i32, i32) {
    %c0_i32 = arith.constant 0 : i32
    %c0_i32_0 = arith.constant 0 : i32
    %c0_i32_1 = arith.constant 0 : i32
    return %c0_i32, %c0_i32_0 : i32, i32
  }
  func.func @transform_3(%arg0: i32) -> (i32, i32) {
    %c0_i32 = arith.constant 0 : i32
    %c0_i32_0 = arith.constant 0 : i32
    %c0_i32_1 = arith.constant 0 : i32
    return %c0_i32, %c0_i32_0 : i32, i32
  }
  func.func @transform_4(%arg0: i32) -> (i32, i32) {
    %c0_i32 = arith.constant 0 : i32
    %c0_i32_0 = arith.constant 0 : i32
    %c0_i32_1 = arith.constant 0 : i32
    return %c0_i32, %c0_i32_0 : i32, i32
  }
  func.func @transform_5(%arg0: i32) -> (i32, i32) {
    %c0_i32 = arith.constant 0 : i32
    %c0_i32_0 = arith.constant 0 : i32
    %c0_i32_1 = arith.constant 0 : i32
    return %c0_i32, %c0_i32_0 : i32, i32
  }
  func.func @transform_6(%arg0: i32) -> (i32, i32) {
    %c0_i32 = arith.constant 0 : i32
    %c0_i32_0 = arith.constant 0 : i32
    %c0_i32_1 = arith.constant 0 : i32
    return %c0_i32, %c0_i32_0 : i32, i32
  }
}

</mosaic_0001>

<llo_original>
// kernel: decoder_rnn_forward.1
$region0: #{decoder_rnn_forward.1}
  #allocation0 [shape = 'u32[]', space=smem, size = 0x4, offset = 0x4, fixed_abs, tag = 'smem constant byte address 0x4 - core index']
  #allocation1 [shape = 'u32[144,128]{1,0:T(1,128)}', space=vmem, size = 0x12000, scoped, tag = 'internal scratch']
  #allocation2 [shape = 'f32[72,512]{1,0:T(8,128)}', space=vmem, size = 0x24000, scoped, tag = 'scratch operand']
  #allocation3 [shape = 'f32[72,128]{1,0:T(8,128)}', space=vmem, size = 0x9000, scoped, tag = 'scratch operand']
  %s0 = inlined_call_operand.vmem [shape: bf16[72,32], index: 0, kind: input, shape index: {}]
  %s1 = inlined_call_operand.vmem [shape: bf16[32,512], index: 1, kind: input, shape index: {}]
  %s2 = inlined_call_operand.vmem [shape: f32[1,512], index: 2, kind: input, shape index: {}]
  %s3 = inlined_call_operand.vmem [shape: bf16[128,512], index: 3, kind: input, shape index: {}]
  %s4 = inlined_call_operand.vmem [shape: bf16[128,128], index: 4, kind: input, shape index: {}]
  %s5 = inlined_call_operand.vmem [shape: f32[1,128], index: 5, kind: input, shape index: {}]
  %s6 = inlined_call_operand.vmem [shape: f32[72,128], index: 6, kind: output, shape index: {}]
  %s7 = sld [smem:[#allocation0]]
  $region34: #{decoder_rnn_forward.1} parent=0
    _
  %s9 = ssub.s32 1, %s7
  %s10 = scalar_select 0, %s9, %s7
  // Predicated region
  $region2: #{decoder_rnn_forward.1} parent=0 // pred_check
    _
  $region3: #{decoder_rnn_forward.1} parent=0 // pred_check_branch
    %12 = sbr.rel (0) target = $region5
  $region4: #{decoder_rnn_forward.1} parent=0 // pred_region
    _
  $region5: #{decoder_rnn_forward.1} parent=0 // pred_fallthru
    _
  // Predicated region
  $region6: #{decoder_rnn_forward.1} parent=0 // pred_check
    _
  $region7: #{decoder_rnn_forward.1} parent=0 // pred_check_branch
    %14 = sbr.rel (0) target = $region9
  $region8: #{decoder_rnn_forward.1} parent=0 // pred_region
    _
  $region9: #{decoder_rnn_forward.1} parent=0 // pred_fallthru
    _
  // Predicated region
  $region10: #{decoder_rnn_forward.1} parent=0 // pred_check
    _
  $region11: #{decoder_rnn_forward.1} parent=0 // pred_check_branch
    %16 = sbr.rel (0) target = $region13
  $region12: #{decoder_rnn_forward.1} parent=0 // pred_region
    _
  $region13: #{decoder_rnn_forward.1} parent=0 // pred_fallthru
    _
  // Predicated region
  $region14: #{decoder_rnn_forward.1} parent=0 // pred_check
    _
  $region15: #{decoder_rnn_forward.1} parent=0 // pred_check_branch
    %18 = sbr.rel (0) target = $region17
  $region16: #{decoder_rnn_forward.1} parent=0 // pred_region
    _
  $region17: #{decoder_rnn_forward.1} parent=0 // pred_fallthru
    _
  // Predicated region
  $region18: #{decoder_rnn_forward.1} parent=0 // pred_check
    _
  $region19: #{decoder_rnn_forward.1} parent=0 // pred_check_branch
    %20 = sbr.rel (0) target = $region21
  $region20: #{decoder_rnn_forward.1} parent=0 // pred_region
    _
  $region21: #{decoder_rnn_forward.1} parent=0 // pred_fallthru
    _
  // Predicated region
  $region22: #{decoder_rnn_forward.1} parent=0 // pred_check
    _
  $region23: #{decoder_rnn_forward.1} parent=0 // pred_check_branch
    %22 = sbr.rel (0) target = $region25
  $region24: #{decoder_rnn_forward.1} parent=0 // pred_region
    _
  $region25: #{decoder_rnn_forward.1} parent=0 // pred_fallthru
    _
  %v24 = vld [vmem:[%s0] sm:$0xf]
  %v25 = vld [vmem:[%s0 + $0x4] sm:$0xf]
  %v26 = vld [vmem:[%s0 + $0x8] sm:$0xf]
  %v27 = vld [vmem:[%s0 + $0xc] sm:$0xf]
  %v28 = vld [vmem:[%s0 + $0x10] sm:$0xf]
  %v29 = vld [vmem:[%s0 + $0x14] sm:$0xf]
  %v30 = vld [vmem:[%s0 + $0x18] sm:$0xf]
  %v31 = vld [vmem:[%s0 + $0x1c] sm:$0xf]
  %v32 = vld [vmem:[%s0 + $0x20] sm:$0xf]
  %v33 = vld [vmem:[%s1] sm:$0xff]
  %v34 = vld [vmem:[%s1 + $0x8] sm:$0xff]
  %v35 = vld [vmem:[%s1 + $0x10] sm:$0xff]
  %v36 = vld [vmem:[%s1 + $0x18] sm:$0xff]
  %v37 = vld [vmem:[%s1 + $0x20] sm:$0xff]
  %v38 = vld [vmem:[%s1 + $0x28] sm:$0xff]
  %v39 = vld [vmem:[%s1 + $0x30] sm:$0xff]
  %v40 = vld [vmem:[%s1 + $0x38] sm:$0xff]
  %v41 = vld [vmem:[%s2] sm:$0xf]
  %v43 = vlaneseq
  %v44 = vshrl.u32 %v43, 7
  %v45 = vsub.s32 0, %v44
  %v46 = vrot.slane %v41, %v45
  %v47 = vlaneseq
  %v48 = vshrl.u32 %v47, 7
  %v49 = vsub.s32 1, %v48
  %v50 = vrot.slane %v41, %v49
  %v51 = vlaneseq
  %v52 = vshrl.u32 %v51, 7
  %v53 = vsub.s32 2, %v52
  %v54 = vrot.slane %v41, %v53
  %v55 = vlaneseq
  %v56 = vshrl.u32 %v55, 7
  %v57 = vsub.s32 3, %v56
  %v58 = vrot.slane %v41, %v57
  %v72 = vunpack.c.l.b16 %v24
  %v73 = vunpack.c.l.b16 %v25
  %v74 = vunpack.c.l.b16 %v26
  %v75 = vunpack.c.l.b16 %v27
  %v76 = vunpack.c.l.b16 %v28
  %v77 = vunpack.c.l.b16 %v29
  %v78 = vunpack.c.l.b16 %v30
  %v79 = vunpack.c.l.b16 %v31
  %v80 = vunpack.c.l.b16 %v32
  %v81 = vpack.c.b16 %v73, %v72
  %v82 = vpack.c.b16 %v75, %v74
  %v83 = vpack.c.b16 %v77, %v76
  %v84 = vpack.c.b16 %v79, %v78
  %v85 = vpack.c.b16 %v80, %v80
  %v94 = vunpack.c.l.b16 %v33
  %v95 = vunpack.c.h.b16 %v33
  %v96 = vunpack.c.l.b16 %v34
  %v97 = vunpack.c.h.b16 %v34
  %v98 = vunpack.c.l.b16 %v35
  %v99 = vunpack.c.h.b16 %v35
  %v100 = vunpack.c.l.b16 %v36
  %v101 = vunpack.c.h.b16 %v36
  %v102 = vunpack.c.l.b16 %v37
  %v103 = vunpack.c.h.b16 %v37
  %v104 = vunpack.c.l.b16 %v38
  %v105 = vunpack.c.h.b16 %v38
  %v106 = vunpack.c.l.b16 %v39
  %v107 = vunpack.c.h.b16 %v39
  %v108 = vunpack.c.l.b16 %v40
  %v109 = vunpack.c.h.b16 %v40
  %v110 = vpack.c.b16 %v98, %v94
  %v111 = vpack.c.b16 %v99, %v95
  %v112 = vpack.c.b16 %v100, %v96
  %v113 = vpack.c.b16 %v101, %v97
  %v114 = vpack.c.b16 %v106, %v102
  %v115 = vpack.c.b16 %v107, %v103
  %v116 = vpack.c.b16 %v108, %v104
  %v117 = vpack.c.b16 %v109, %v105
  %vm126 = vcmask 261120
  %v128 = vsel %vm126, %v81, 0
  %v131 = vsel %vm126, %v82, 0
  %v134 = vsel %vm126, %v83, 0
  %v137 = vsel %vm126, %v84, 0
  %v140 = vsel %vm126, %v85, 0
  %142 = vmatprep.subr.bf16.mxu0 0
  %143 = vmatpush1.bf16.msra.mxu0 0
  %144 = vmatprep.subr.bf16.mxu0 0
  %145 = vmatpush1.bf16.msra.mxu0 0
  %146 = vmatprep.subr.bf16.mxu0 0
  %147 = vmatpush1.bf16.msra.mxu0 0
  %148 = vmatprep.subr.bf16.mxu0 0
  %149 = vmatpush1.bf16.msra.mxu0 0
  %150 = vmatprep.subr.bf16.mxu0 0
  %151 = vmatpush1.bf16.msra.mxu0 0
  %152 = vmatprep.subr.bf16.mxu0 0
  %153 = vmatpush1.bf16.msra.mxu0 0
  %154 = vmatprep.subr.bf16.mxu0 %v115
  %155 = vmatpush1.bf16.msra.mxu0 %v114
  %156 = vmatprep.subr.bf16.mxu0 %v111
  %157 = vmatpush1.bf16.msra.mxu0 %v110
  %158 = vmatprep.subr.bf16.mxu0 0
  %159 = vmatpush2.bf16.msra.mxu0 0
  %160 = vmatprep.subr.bf16.mxu0 0
  %161 = vmatpush2.bf16.msra.mxu0 0
  %162 = vmatprep.subr.bf16.mxu0 0
  %163 = vmatpush2.bf16.msra.mxu0 0
  %164 = vmatprep.subr.bf16.mxu0 0
  %165 = vmatpush2.bf16.msra.mxu0 0
  %166 = vmatprep.subr.bf16.mxu0 0
  %167 = vmatpush2.bf16.msra.mxu0 0
  %168 = vmatprep.subr.bf16.mxu0 0
  %169 = vmatpush2.bf16.msra.mxu0 0
  %170 = vmatprep.subr.bf16.mxu0 0
  %171 = vmatpush2.bf16.msra.mxu0 0
  %172 = vmatprep.subr.bf16.mxu0 0
  %173 = vmatpush2.bf16.msra.mxu0 0
  %174 = vmatprep.mubr.bf16.mxu0 0
  %175 = vmatmul.mubr.bf16.gmra.mxu0 %v128
  %v176 = vpop.f32.mrf.mxu0
  %v177 = vadd.f32 %v46, %v176
  %v178 = vpop.f32.mrf.mxu0
  %v179 = vadd.f32 %v50, %v178
  %v180 = vpop.f32.mrf.mxu0
  %v181 = vadd.f32 %v46, %v180
  %v182 = vpop.f32.mrf.mxu0
  %v183 = vadd.f32 %v50, %v182
  %184 = vmatprep.mubr.bf16.mxu0 0
  %185 = vmatmul.mubr.bf16.gmra.mxu0 %v131
  %v186 = vpop.f32.mrf.mxu0
  %v187 = vadd.f32 %v46, %v186
  %v188 = vpop.f32.mrf.mxu0
  %v189 = vadd.f32 %v50, %v188
  %v190 = vpop.f32.mrf.mxu0
  %v191 = vadd.f32 %v46, %v190
  %v192 = vpop.f32.mrf.mxu0
  %v193 = vadd.f32 %v50, %v192
  %194 = vmatprep.mubr.bf16.mxu0 0
  %195 = vmatmul.mubr.bf16.gmra.mxu0 %v134
  %v196 = vpop.f32.mrf.mxu0
  %v197 = vadd.f32 %v46, %v196
  %v198 = vpop.f32.mrf.mxu0
  %v199 = vadd.f32 %v50, %v198
  %v200 = vpop.f32.mrf.mxu0
  %v201 = vadd.f32 %v46, %v200
  %v202 = vpop.f32.mrf.mxu0
  %v203 = vadd.f32 %v50, %v202
  %204 = vmatprep.mubr.bf16.mxu0 0
  %205 = vmatmul.mubr.bf16.gmra.mxu0 %v137
  %v206 = vpop.f32.mrf.mxu0
  %v207 = vadd.f32 %v46, %v206
  %v208 = vpop.f32.mrf.mxu0
  %v209 = vadd.f32 %v50, %v208
  %v210 = vpop.f32.mrf.mxu0
  %v211 = vadd.f32 %v46, %v210
  %v212 = vpop.f32.mrf.mxu0
  %v213 = vadd.f32 %v50, %v212
  %214 = vmatprep.mubr.bf16.mxu0 0
  %215 = vmatmul.mubr.bf16.gmra.mxu0 %v140
  %v216 = vpop.f32.mrf.mxu0
  %v217 = vadd.f32 %v46, %v216
  %v218 = vpop.f32.mrf.mxu0
  %v219 = vadd.f32 %v50, %v218
  %v220 = vpop.f32.mrf.mxu0
  %v221 = vpop.f32.mrf.mxu0
  %222 = vdwg.mxu0
  %223 = vmatprep.subr.bf16.mxu0 0
  %224 = vmatpush1.bf16.msra.mxu0 0
  %225 = vmatprep.subr.bf16.mxu0 0
  %226 = vmatpush1.bf16.msra.mxu0 0
  %227 = vmatprep.subr.bf16.mxu0 0
  %228 = vmatpush1.bf16.msra.mxu0 0
  %229 = vmatprep.subr.bf16.mxu0 0
  %230 = vmatpush1.bf16.msra.mxu0 0
  %231 = vmatprep.subr.bf16.mxu0 0
  %232 = vmatpush1.bf16.msra.mxu0 0
  %233 = vmatprep.subr.bf16.mxu0 0
  %234 = vmatpush1.bf16.msra.mxu0 0
  %235 = vmatprep.subr.bf16.mxu0 %v117
  %236 = vmatpush1.bf16.msra.mxu0 %v116
  %237 = vmatprep.subr.bf16.mxu0 %v113
  %238 = vmatpush1.bf16.msra.mxu0 %v112
  %239 = vmatprep.subr.bf16.mxu0 0
  %240 = vmatpush2.bf16.msra.mxu0 0
  %241 = vmatprep.subr.bf16.mxu0 0
  %242 = vmatpush2.bf16.msra.mxu0 0
  %243 = vmatprep.subr.bf16.mxu0 0
  %244 = vmatpush2.bf16.msra.mxu0 0
  %245 = vmatprep.subr.bf16.mxu0 0
  %246 = vmatpush2.bf16.msra.mxu0 0
  %247 = vmatprep.subr.bf16.mxu0 0
  %248 = vmatpush2.bf16.msra.mxu0 0
  %249 = vmatprep.subr.bf16.mxu0 0
  %250 = vmatpush2.bf16.msra.mxu0 0
  %251 = vmatprep.subr.bf16.mxu0 0
  %252 = vmatpush2.bf16.msra.mxu0 0
  %253 = vmatprep.subr.bf16.mxu0 0
  %254 = vmatpush2.bf16.msra.mxu0 0
  %255 = vmatprep.mubr.bf16.mxu0 0
  %256 = vmatmul.mubr.bf16.gmra.mxu0 %v128
  %v257 = vpop.f32.mrf.mxu0
  %v258 = vadd.f32 %v54, %v257
  %v259 = vpop.f32.mrf.mxu0
  %v260 = vadd.f32 %v58, %v259
  %v261 = vpop.f32.mrf.mxu0
  %v262 = vadd.f32 %v54, %v261
  %v263 = vpop.f32.mrf.mxu0
  %v264 = vadd.f32 %v58, %v263
  %265 = vmatprep.mubr.bf16.mxu0 0
  %266 = vmatmul.mubr.bf16.gmra.mxu0 %v131
  %v267 = vpop.f32.mrf.mxu0
  %v268 = vadd.f32 %v54, %v267
  %v269 = vpop.f32.mrf.mxu0
  %v270 = vadd.f32 %v58, %v269
  %v271 = vpop.f32.mrf.mxu0
  %v272 = vadd.f32 %v54, %v271
  %v273 = vpop.f32.mrf.mxu0
  %v274 = vadd.f32 %v58, %v273
  %275 = vmatprep.mubr.bf16.mxu0 0
  %276 = vmatmul.mubr.bf16.gmra.mxu0 %v134
  %v277 = vpop.f32.mrf.mxu0
  %v278 = vadd.f32 %v54, %v277
  %v279 = vpop.f32.mrf.mxu0
  %v280 = vadd.f32 %v58, %v279
  %v281 = vpop.f32.mrf.mxu0
  %v282 = vadd.f32 %v54, %v281
  %v283 = vpop.f32.mrf.mxu0
  %v284 = vadd.f32 %v58, %v283
  %285 = vmatprep.mubr.bf16.mxu0 0
  %286 = vmatmul.mubr.bf16.gmra.mxu0 %v137
  %v287 = vpop.f32.mrf.mxu0
  %v288 = vadd.f32 %v54, %v287
  %v289 = vpop.f32.mrf.mxu0
  %v290 = vadd.f32 %v58, %v289
  %v291 = vpop.f32.mrf.mxu0
  %v292 = vadd.f32 %v54, %v291
  %v293 = vpop.f32.mrf.mxu0
  %v294 = vadd.f32 %v58, %v293
  %295 = vmatprep.mubr.bf16.mxu0 0
  %296 = vmatmul.mubr.bf16.gmra.mxu0 %v140
  %v297 = vpop.f32.mrf.mxu0
  %v298 = vadd.f32 %v54, %v297
  %v299 = vpop.f32.mrf.mxu0
  %v300 = vadd.f32 %v58, %v299
  %v301 = vpop.f32.mrf.mxu0
  %v302 = vpop.f32.mrf.mxu0
  %303 = vdwg.mxu0
  %304 = vst [vmem:[#allocation2] sm:$0xff] %v177
  %305 = vst [vmem:[#allocation2 + $0x8] sm:$0xff] %v179
  %306 = vst [vmem:[#allocation2 + $0x10] sm:$0xff] %v258
  %307 = vst [vmem:[#allocation2 + $0x18] sm:$0xff] %v260
  %308 = vst [vmem:[#allocation2 + $0x20] sm:$0xff] %v181
  %309 = vst [vmem:[#allocation2 + $0x28] sm:$0xff] %v183
  %310 = vst [vmem:[#allocation2 + $0x30] sm:$0xff] %v262
  %311 = vst [vmem:[#allocation2 + $0x38] sm:$0xff] %v264
  %312 = vst [vmem:[#allocation2 + $0x40] sm:$0xff] %v187
  %313 = vst [vmem:[#allocation2 + $0x48] sm:$0xff] %v189
  %314 = vst [vmem:[#allocation2 + $0x50] sm:$0xff] %v268
  %315 = vst [vmem:[#allocation2 + $0x58] sm:$0xff] %v270
  %316 = vst [vmem:[#allocation2 + $0x60] sm:$0xff] %v191
  %317 = vst [vmem:[#allocation2 + $0x68] sm:$0xff] %v193
  %318 = vst [vmem:[#allocation2 + $0x70] sm:$0xff] %v272
  %319 = vst [vmem:[#allocation2 + $0x78] sm:$0xff] %v274
  %320 = vst [vmem:[#allocation2 + $0x80] sm:$0xff] %v197
  %321 = vst [vmem:[#allocation2 + $0x88] sm:$0xff] %v199
  %322 = vst [vmem:[#allocation2 + $0x90] sm:$0xff] %v278
  %323 = vst [vmem:[#allocation2 + $0x98] sm:$0xff] %v280
  %324 = vst [vmem:[#allocation2 + $0xa0] sm:$0xff] %v201
  %325 = vst [vmem:[#allocation2 + $0xa8] sm:$0xff] %v203
  %326 = vst [vmem:[#allocation2 + $0xb0] sm:$0xff] %v282
  %327 = vst [vmem:[#allocation2 + $0xb8] sm:$0xff] %v284
  %328 = vst [vmem:[#allocation2 + $0xc0] sm:$0xff] %v207
  %329 = vst [vmem:[#allocation2 + $0xc8] sm:$0xff] %v209
  %330 = vst [vmem:[#allocation2 + $0xd0] sm:$0xff] %v288
  %331 = vst [vmem:[#allocation2 + $0xd8] sm:$0xff] %v290
  %332 = vst [vmem:[#allocation2 + $0xe0] sm:$0xff] %v211
  %333 = vst [vmem:[#allocation2 + $0xe8] sm:$0xff] %v213
  %334 = vst [vmem:[#allocation2 + $0xf0] sm:$0xff] %v292
  %335 = vst [vmem:[#allocation2 + $0xf8] sm:$0xff] %v294
  %336 = vst [vmem:[#allocation2 + $0x100] sm:$0xff] %v217
  %337 = vst [vmem:[#allocation2 + $0x108] sm:$0xff] %v219
  %338 = vst [vmem:[#allocation2 + $0x110] sm:$0xff] %v298
  %339 = vst [vmem:[#allocation2 + $0x118] sm:$0xff] %v300
  %v340 = vld [vmem:[%s3] sm:$0xff]
  %v341 = vld [vmem:[%s3 + $0x8] sm:$0xff]
  %v342 = vld [vmem:[%s3 + $0x10] sm:$0xff]
  %v343 = vld [vmem:[%s3 + $0x18] sm:$0xff]
  %v344 = vld [vmem:[%s3 + $0x20] sm:$0xff]
  %v345 = vld [vmem:[%s3 + $0x28] sm:$0xff]
  %v346 = vld [vmem:[%s3 + $0x30] sm:$0xff]
  %v347 = vld [vmem:[%s3 + $0x38] sm:$0xff]
  %v348 = vld [vmem:[%s3 + $0x40] sm:$0xff]
  %v349 = vld [vmem:[%s3 + $0x48] sm:$0xff]
  %v350 = vld [vmem:[%s3 + $0x50] sm:$0xff]
  %v351 = vld [vmem:[%s3 + $0x58] sm:$0xff]
  %v352 = vld [vmem:[%s3 + $0x60] sm:$0xff]
  %v353 = vld [vmem:[%s3 + $0x68] sm:$0xff]
  %v354 = vld [vmem:[%s3 + $0x70] sm:$0xff]
  %v355 = vld [vmem:[%s3 + $0x78] sm:$0xff]
  %v356 = vld [vmem:[%s3 + $0x80] sm:$0xff]
  %v357 = vld [vmem:[%s3 + $0x88] sm:$0xff]
  %v358 = vld [vmem:[%s3 + $0x90] sm:$0xff]
  %v359 = vld [vmem:[%s3 + $0x98] sm:$0xff]
  %v360 = vld [vmem:[%s3 + $0xa0] sm:$0xff]
  %v361 = vld [vmem:[%s3 + $0xa8] sm:$0xff]
  %v362 = vld [vmem:[%s3 + $0xb0] sm:$0xff]
  %v363 = vld [vmem:[%s3 + $0xb8] sm:$0xff]
  %v364 = vld [vmem:[%s3 + $0xc0] sm:$0xff]
  %v365 = vld [vmem:[%s3 + $0xc8] sm:$0xff]
  %v366 = vld [vmem:[%s3 + $0xd0] sm:$0xff]
  %v367 = vld [vmem:[%s3 + $0xd8] sm:$0xff]
  %v368 = vld [vmem:[%s3 + $0xe0] sm:$0xff]
  %v369 = vld [vmem:[%s3 + $0xe8] sm:$0xff]
  %v370 = vld [vmem:[%s3 + $0xf0] sm:$0xff]
  %v371 = vld [vmem:[%s3 + $0xf8] sm:$0xff]
  %s372 = smul.u32 0, 4
  %s373 = smul.addr %s372, 8
  %s374 = scalar_lea.vmem [#allocation2], %s373
  %v375 = vld [vmem:[%s374] sm:$0xff]
  %v376 = vld [vmem:[%s374 + $0x8] sm:$0xff]
  %v377 = vld [vmem:[%s374 + $0x10] sm:$0xff]
  %v378 = vld [vmem:[%s374 + $0x18] sm:$0xff]
  %v411 = vunpack.c.l.b16 %v340
  %v412 = vunpack.c.h.b16 %v340
  %v413 = vunpack.c.l.b16 %v341
  %v414 = vunpack.c.h.b16 %v341
  %v415 = vunpack.c.l.b16 %v342
  %v416 = vunpack.c.h.b16 %v342
  %v417 = vunpack.c.l.b16 %v343
  %v418 = vunpack.c.h.b16 %v343
  %v419 = vunpack.c.l.b16 %v344
  %v420 = vunpack.c.h.b16 %v344
  %v421 = vunpack.c.l.b16 %v345
  %v422 = vunpack.c.h.b16 %v345
  %v423 = vunpack.c.l.b16 %v346
  %v424 = vunpack.c.h.b16 %v346
  %v425 = vunpack.c.l.b16 %v347
  %v426 = vunpack.c.h.b16 %v347
  %v427 = vunpack.c.l.b16 %v348
  %v428 = vunpack.c.h.b16 %v348
  %v429 = vunpack.c.l.b16 %v349
  %v430 = vunpack.c.h.b16 %v349
  %v431 = vunpack.c.l.b16 %v350
  %v432 = vunpack.c.h.b16 %v350
  %v433 = vunpack.c.l.b16 %v351
  %v434 = vunpack.c.h.b16 %v351
  %v435 = vunpack.c.l.b16 %v352
  %v436 = vunpack.c.h.b16 %v352
  %v437 = vunpack.c.l.b16 %v353
  %v438 = vunpack.c.h.b16 %v353
  %v439 = vunpack.c.l.b16 %v354
  %v440 = vunpack.c.h.b16 %v354
  %v441 = vunpack.c.l.b16 %v355
  %v442 = vunpack.c.h.b16 %v355
  %v443 = vunpack.c.l.b16 %v356
  %v444 = vunpack.c.h.b16 %v356
  %v445 = vunpack.c.l.b16 %v357
  %v446 = vunpack.c.h.b16 %v357
  %v447 = vunpack.c.l.b16 %v358
  %v448 = vunpack.c.h.b16 %v358
  %v449 = vunpack.c.l.b16 %v359
  %v450 = vunpack.c.h.b16 %v359
  %v451 = vunpack.c.l.b16 %v360
  %v452 = vunpack.c.h.b16 %v360
  %v453 = vunpack.c.l.b16 %v361
  %v454 = vunpack.c.h.b16 %v361
  %v455 = vunpack.c.l.b16 %v362
  %v456 = vunpack.c.h.b16 %v362
  %v457 = vunpack.c.l.b16 %v363
  %v458 = vunpack.c.h.b16 %v363
  %v459 = vunpack.c.l.b16 %v364
  %v460 = vunpack.c.h.b16 %v364
  %v461 = vunpack.c.l.b16 %v365
  %v462 = vunpack.c.h.b16 %v365
  %v463 = vunpack.c.l.b16 %v366
  %v464 = vunpack.c.h.b16 %v366
  %v465 = vunpack.c.l.b16 %v367
  %v466 = vunpack.c.h.b16 %v367
  %v467 = vunpack.c.l.b16 %v368
  %v468 = vunpack.c.h.b16 %v368
  %v469 = vunpack.c.l.b16 %v369
  %v470 = vunpack.c.h.b16 %v369
  %v471 = vunpack.c.l.b16 %v370
  %v472 = vunpack.c.h.b16 %v370
  %v473 = vunpack.c.l.b16 %v371
  %v474 = vunpack.c.h.b16 %v371
  %v475 = vpack.c.b16 %v415, %v411
  %v476 = vpack.c.b16 %v416, %v412
  %v477 = vpack.c.b16 %v417, %v413
  %v478 = vpack.c.b16 %v418, %v414
  %v479 = vpack.c.b16 %v423, %v419
  %v480 = vpack.c.b16 %v424, %v420
  %v481 = vpack.c.b16 %v425, %v421
  %v482 = vpack.c.b16 %v426, %v422
  %v483 = vpack.c.b16 %v431, %v427
  %v484 = vpack.c.b16 %v432, %v428
  %v485 = vpack.c.b16 %v433, %v429
  %v486 = vpack.c.b16 %v434, %v430
  %v487 = vpack.c.b16 %v439, %v435
  %v488 = vpack.c.b16 %v440, %v436
  %v489 = vpack.c.b16 %v441, %v437
  %v490 = vpack.c.b16 %v442, %v438
  %v491 = vpack.c.b16 %v447, %v443
  %v492 = vpack.c.b16 %v448, %v444
  %v493 = vpack.c.b16 %v449, %v445
  %v494 = vpack.c.b16 %v450, %v446
  %v495 = vpack.c.b16 %v455, %v451
  %v496 = vpack.c.b16 %v456, %v452
  %v497 = vpack.c.b16 %v457, %v453
  %v498 = vpack.c.b16 %v458, %v454
  %v499 = vpack.c.b16 %v463, %v459
  %v500 = vpack.c.b16 %v464, %v460
  %v501 = vpack.c.b16 %v465, %v461
  %v502 = vpack.c.b16 %v466, %v462
  %v503 = vpack.c.b16 %v471, %v467
  %v504 = vpack.c.b16 %v472, %v468
  %v505 = vpack.c.b16 %v473, %v469
  %v506 = vpack.c.b16 %v474, %v470
  %539 = vmatprep.subr.bf16.mxu0 %v504
  %540 = vmatpush1.bf16.msra.mxu0 %v503
  %541 = vmatprep.subr.bf16.mxu0 %v500
  %542 = vmatpush1.bf16.msra.mxu0 %v499
  %543 = vmatprep.subr.bf16.mxu0 %v496
  %544 = vmatpush1.bf16.msra.mxu0 %v495
  %545 = vmatprep.subr.bf16.mxu0 %v492
  %546 = vmatpush1.bf16.msra.mxu0 %v491
  %547 = vmatprep.subr.bf16.mxu0 %v488
  %548 = vmatpush1.bf16.msra.mxu0 %v487
  %549 = vmatprep.subr.bf16.mxu0 %v484
  %550 = vmatpush1.bf16.msra.mxu0 %v483
  %551 = vmatprep.subr.bf16.mxu0 %v480
  %552 = vmatpush1.bf16.msra.mxu0 %v479
  %553 = vmatprep.subr.bf16.mxu0 %v476
  %554 = vmatpush1.bf16.msra.mxu0 %v475
  %555 = vmatprep.subr.bf16.mxu0 0
  %556 = vmatpush2.bf16.msra.mxu0 0
  %557 = vmatprep.subr.bf16.mxu0 0
  %558 = vmatpush2.bf16.msra.mxu0 0
  %559 = vmatprep.subr.bf16.mxu0 0
  %560 = vmatpush2.bf16.msra.mxu0 0
  %561 = vmatprep.subr.bf16.mxu0 0
  %562 = vmatpush2.bf16.msra.mxu0 0
  %563 = vmatprep.subr.bf16.mxu0 0
  %564 = vmatpush2.bf16.msra.mxu0 0
  %565 = vmatprep.subr.bf16.mxu0 0
  %566 = vmatpush2.bf16.msra.mxu0 0
  %567 = vmatprep.subr.bf16.mxu0 0
  %568 = vmatpush2.bf16.msra.mxu0 0
  %569 = vmatprep.subr.bf16.mxu0 0
  %570 = vmatpush2.bf16.msra.mxu0 0
  %571 = vmatprep.mubr.bf16.mxu0 0
  %572 = vmatmul.mubr.bf16.gmra.mxu0 0
  %v573 = vpop.f32.mrf.mxu0
  %v574 = vadd.f32 0.0, %v573
  %v575 = vpop.f32.mrf.mxu0
  %v576 = vadd.f32 0.0, %v575
  %v577 = vpop.f32.mrf.mxu0
  %v578 = vpop.f32.mrf.mxu0
  %579 = vdwg.mxu0
  %580 = vmatprep.subr.bf16.mxu0 %v506
  %581 = vmatpush1.bf16.msra.mxu0 %v505
  %582 = vmatprep.subr.bf16.mxu0 %v502
  %583 = vmatpush1.bf16.msra.mxu0 %v501
  %584 = vmatprep.subr.bf16.mxu0 %v498
  %585 = vmatpush1.bf16.msra.mxu0 %v497
  %586 = vmatprep.subr.bf16.mxu0 %v494
  %587 = vmatpush1.bf16.msra.mxu0 %v493
  %588 = vmatprep.subr.bf16.mxu0 %v490
  %589 = vmatpush1.bf16.msra.mxu0 %v489
  %590 = vmatprep.subr.bf16.mxu0 %v486
  %591 = vmatpush1.bf16.msra.mxu0 %v485
  %592 = vmatprep.subr.bf16.mxu0 %v482
  %593 = vmatpush1.bf16.msra.mxu0 %v481
  %594 = vmatprep.subr.bf16.mxu0 %v478
  %595 = vmatpush1.bf16.msra.mxu0 %v477
  %596 = vmatprep.subr.bf16.mxu0 0
  %597 = vmatpush2.bf16.msra.mxu0 0
  %598 = vmatprep.subr.bf16.mxu0 0
  %599 = vmatpush2.bf16.msra.mxu0 0
  %600 = vmatprep.subr.bf16.mxu0 0
  %601 = vmatpush2.bf16.msra.mxu0 0
  %602 = vmatprep.subr.bf16.mxu0 0
  %603 = vmatpush2.bf16.msra.mxu0 0
  %604 = vmatprep.subr.bf16.mxu0 0
  %605 = vmatpush2.bf16.msra.mxu0 0
  %606 = vmatprep.subr.bf16.mxu0 0
  %607 = vmatpush2.bf16.msra.mxu0 0
  %608 = vmatprep.subr.bf16.mxu0 0
  %609 = vmatpush2.bf16.msra.mxu0 0
  %610 = vmatprep.subr.bf16.mxu0 0
  %611 = vmatpush2.bf16.msra.mxu0 0
  %612 = vmatprep.mubr.bf16.mxu0 0
  %613 = vmatmul.mubr.bf16.gmra.mxu0 0
  %v614 = vpop.f32.mrf.mxu0
  %v615 = vadd.f32 0.0, %v614
  %v616 = vpop.f32.mrf.mxu0
  %v617 = vadd.f32 0.0, %v616
  %v618 = vpop.f32.mrf.mxu0
  %v619 = vpop.f32.mrf.mxu0
  %620 = vdwg.mxu0
  %v621 = vadd.f32 %v375, %v574
  %v622 = vadd.f32 %v376, %v576
  %v623 = vadd.f32 %v377, %v615
  %v624 = vadd.f32 %v378, %v617
  %v625 = vxor.u32 %v621, 2147483648
  %v626 = vxor.u32 %v622, 2147483648
  %v627 = vxor.u32 %v623, 2147483648
  %v628 = vmul.f32 %v625, 1.442695
  %v629 = vpow.pop %v628
  %v630 = vmul.f32 %v626, 1.442695
  %v631 = vpow.pop %v630
  %v632 = vmul.f32 %v627, 1.442695
  %v633 = vpow.pop %v632
  %v634 = vadd.f32 %v629, 1.0
  %v635 = vadd.f32 %v631, 1.0
  %v636 = vadd.f32 %v633, 1.0
  %v637 = vrcp.pop %v634
  %v638 = vmul.f32 1.0, %v637
  %v639 = vrcp.pop %v635
  %v640 = vmul.f32 1.0, %v639
  %v641 = vrcp.pop %v636
  %v642 = vmul.f32 1.0, %v641
  %v643 = vtanh.pop %v624
  %v644 = vmul.f32 %v640, 0.0
  %v645 = vmul.f32 %v638, %v643
  %v646 = vadd.f32 %v644, %v645
  %v647 = vtanh.pop %v646
  %v648 = vmul.f32 %v642, %v647
  %649 = vst [vmem:[#allocation3] sm:$0xff] %v648
  %s650 = smul.u32 1, 4
  %s651 = smul.addr %s650, 8
  %s652 = scalar_lea.vmem [#allocation2], %s651
  %v653 = vld [vmem:[%s652] sm:$0xff]
  %v654 = vld [vmem:[%s652 + $0x8] sm:$0xff]
  %v655 = vld [vmem:[%s652 + $0x10] sm:$0xff]
  %v656 = vld [vmem:[%s652 + $0x18] sm:$0xff]
  %v657 = vpack.c.bf16 %v648, %v648
  %658 = vmatprep.subr.bf16.mxu0 %v504
  %659 = vmatpush1.bf16.msra.mxu0 %v503
  %660 = vmatprep.subr.bf16.mxu0 %v500
  %661 = vmatpush1.bf16.msra.mxu0 %v499
  %662 = vmatprep.subr.bf16.mxu0 %v496
  %663 = vmatpush1.bf16.msra.mxu0 %v495
  %664 = vmatprep.subr.bf16.mxu0 %v492
  %665 = vmatpush1.bf16.msra.mxu0 %v491
  %666 = vmatprep.subr.bf16.mxu0 %v488
  %667 = vmatpush1.bf16.msra.mxu0 %v487
  %668 = vmatprep.subr.bf16.mxu0 %v484
  %669 = vmatpush1.bf16.msra.mxu0 %v483
  %670 = vmatprep.subr.bf16.mxu0 %v480
  %671 = vmatpush1.bf16.msra.mxu0 %v479
  %672 = vmatprep.subr.bf16.mxu0 %v476
  %673 = vmatpush1.bf16.msra.mxu0 %v475
  %674 = vmatprep.subr.bf16.mxu0 0
  %675 = vmatpush2.bf16.msra.mxu0 0
  %676 = vmatprep.subr.bf16.mxu0 0
  %677 = vmatpush2.bf16.msra.mxu0 0
  %678 = vmatprep.subr.bf16.mxu0 0
  %679 = vmatpush2.bf16.msra.mxu0 0
  %680 = vmatprep.subr.bf16.mxu0 0
  %681 = vmatpush2.bf16.msra.mxu0 0
  %682 = vmatprep.subr.bf16.mxu0 0
  %683 = vmatpush2.bf16.msra.mxu0 0
  %684 = vmatprep.subr.bf16.mxu0 0
  %685 = vmatpush2.bf16.msra.mxu0 0
  %686 = vmatprep.subr.bf16.mxu0 0
  %687 = vmatpush2.bf16.msra.mxu0 0
  %688 = vmatprep.subr.bf16.mxu0 0
  %689 = vmatpush2.bf16.msra.mxu0 0
  %690 = vmatprep.mubr.bf16.mxu0 0
  %691 = vmatmul.mubr.bf16.gmra.mxu0 %v657
  %v692 = vpop.f32.mrf.mxu0
  %v693 = vadd.f32 0.0, %v692
  %v694 = vpop.f32.mrf.mxu0
  %v695 = vadd.f32 0.0, %v694
  %v696 = vpop.f32.mrf.mxu0
  %v697 = vpop.f32.mrf.mxu0
  %698 = vdwg.mxu0
  %699 = vmatprep.subr.bf16.mxu0 %v506
  %700 = vmatpush1.bf16.msra.mxu0 %v505
  %701 = vmatprep.subr.bf16.mxu0 %v502
  %702 = vmatpush1.bf16.msra.mxu0 %v501
  %703 = vmatprep.subr.bf16.mxu0 %v498
  %704 = vmatpush1.bf16.msra.mxu0 %v497
  %705 = vmatprep.subr.bf16.mxu0 %v494
  %706 = vmatpush1.bf16.msra.mxu0 %v493
  %707 = vmatprep.subr.bf16.mxu0 %v490
  %708 = vmatpush1.bf16.msra.mxu0 %v489
  %709 = vmatprep.subr.bf16.mxu0 %v486
  %710 = vmatpush1.bf16.msra.mxu0 %v485
  %711 = vmatprep.subr.bf16.mxu0 %v482
  %712 = vmatpush1.bf16.msra.mxu0 %v481
  %713 = vmatprep.subr.bf16.mxu0 %v478
  %714 = vmatpush1.bf16.msra.mxu0 %v477
  %715 = vmatprep.subr.bf16.mxu0 0
  %716 = vmatpush2.bf16.msra.mxu0 0
  %717 = vmatprep.subr.bf16.mxu0 0
  %718 = vmatpush2.bf16.msra.mxu0 0
  %719 = vmatprep.subr.bf16.mxu0 0
  %720 = vmatpush2.bf16.msra.mxu0 0
  %721 = vmatprep.subr.bf16.mxu0 0
  %722 = vmatpush2.bf16.msra.mxu0 0
  %723 = vmatprep.subr.bf16.mxu0 0
  %724 = vmatpush2.bf16.msra.mxu0 0
  %725 = vmatprep.subr.bf16.mxu0 0
  %726 = vmatpush2.bf16.msra.mxu0 0
  %727 = vmatprep.subr.bf16.mxu0 0
  %728 = vmatpush2.bf16.msra.mxu0 0
  %729 = vmatprep.subr.bf16.mxu0 0
  %730 = vmatpush2.bf16.msra.mxu0 0
  %731 = vmatprep.mubr.bf16.mxu0 0
  %732 = vmatmul.mubr.bf16.gmra.mxu0 %v657
  %v733 = vpop.f32.mrf.mxu0
  %v734 = vadd.f32 0.0, %v733
  %v735 = vpop.f32.mrf.mxu0
  %v736 = vadd.f32 0.0, %v735
  %v737 = vpop.f32.mrf.mxu0
  %v738 = vpop.f32.mrf.mxu0
  %739 = vdwg.mxu0
  %v740 = vadd.f32 %v653, %v693
  %v741 = vadd.f32 %v654, %v695
  %v742 = vadd.f32 %v655, %v734
  %v743 = vadd.f32 %v656, %v736
  %v744 = vxor.u32 %v740, 2147483648
  %v745 = vxor.u32 %v741, 2147483648
  %v746 = vxor.u32 %v742, 2147483648
  %v747 = vmul.f32 %v744, 1.442695
  %v748 = vpow.pop %v747
  %v749 = vmul.f32 %v745, 1.442695
  %v750 = vpow.pop %v749
  %v751 = vmul.f32 %v746, 1.442695
  %v752 = vpow.pop %v751
  %v753 = vadd.f32 %v748, 1.0
  %v754 = vadd.f32 %v750, 1.0
  %v755 = vadd.f32 %v752, 1.0
  %v756 = vrcp.pop %v753
  %v757 = vmul.f32 1.0, %v756
  %v758 = vrcp.pop %v754
  %v759 = vmul.f32 1.0, %v758
  %v760 = vrcp.pop %v755
  %v761 = vmul.f32 1.0, %v760
  %v762 = vtanh.pop %v743
  %v763 = vmul.f32 %v759, %v646
  %v764 = vmul.f32 %v757, %v762
  %v765 = vadd.f32 %v763, %v764
  %v766 = vtanh.pop %v765
  %v767 = vmul.f32 %v761, %v766
  %s768 = scalar_lea.vmem [#allocation3], 8
  %769 = vst [vmem:[%s768] sm:$0xff] %v767
  %s770 = smul.u32 2, 4
  %s771 = smul.addr %s770, 8
  %s772 = scalar_lea.vmem [#allocation2], %s771
  %v773 = vld [vmem:[%s772] sm:$0xff]
  %v774 = vld [vmem:[%s772 + $0x8] sm:$0xff]
  %v775 = vld [vmem:[%s772 + $0x10] sm:$0xff]
  %v776 = vld [vmem:[%s772 + $0x18] sm:$0xff]
  %v777 = vpack.c.bf16 %v767, %v767
  %778 = vmatprep.subr.bf16.mxu0 %v504
  %779 = vmatpush1.bf16.msra.mxu0 %v503
  %780 = vmatprep.subr.bf16.mxu0 %v500
  %781 = vmatpush1.bf16.msra.mxu0 %v499
  %782 = vmatprep.subr.bf16.mxu0 %v496
  %783 = vmatpush1.bf16.msra.mxu0 %v495
  %784 = vmatprep.subr.bf16.mxu0 %v492
  %785 = vmatpush1.bf16.msra.mxu0 %v491
  %786 = vmatprep.subr.bf16.mxu0 %v488
  %787 = vmatpush1.bf16.msra.mxu0 %v487
  %788 = vmatprep.subr.bf16.mxu0 %v484
  %789 = vmatpush1.bf16.msra.mxu0 %v483
  %790 = vmatprep.subr.bf16.mxu0 %v480
  %791 = vmatpush1.bf16.msra.mxu0 %v479
  %792 = vmatprep.subr.bf16.mxu0 %v476
  %793 = vmatpush1.bf16.msra.mxu0 %v475
  %794 = vmatprep.subr.bf16.mxu0 0
  %795 = vmatpush2.bf16.msra.mxu0 0
  %796 = vmatprep.subr.bf16.mxu0 0
  %797 = vmatpush2.bf16.msra.mxu0 0
  %798 = vmatprep.subr.bf16.mxu0 0
  %799 = vmatpush2.bf16.msra.mxu0 0
  %800 = vmatprep.subr.bf16.mxu0 0
  %801 = vmatpush2.bf16.msra.mxu0 0
  %802 = vmatprep.subr.bf16.mxu0 0
  %803 = vmatpush2.bf16.msra.mxu0 0
  %804 = vmatprep.subr.bf16.mxu0 0
  %805 = vmatpush2.bf16.msra.mxu0 0
  %806 = vmatprep.subr.bf16.mxu0 0
  %807 = vmatpush2.bf16.msra.mxu0 0
  %808 = vmatprep.subr.bf16.mxu0 0
  %809 = vmatpush2.bf16.msra.mxu0 0
  %810 = vmatprep.mubr.bf16.mxu0 0
  %811 = vmatmul.mubr.bf16.gmra.mxu0 %v777
  %v812 = vpop.f32.mrf.mxu0
  %v813 = vadd.f32 0.0, %v812
  %v814 = vpop.f32.mrf.mxu0
  %v815 = vadd.f32 0.0, %v814
  %v816 = vpop.f32.mrf.mxu0
  %v817 = vpop.f32.mrf.mxu0
  %818 = vdwg.mxu0
  %819 = vmatprep.subr.bf16.mxu0 %v506
  %820 = vmatpush1.bf16.msra.mxu0 %v505
  %821 = vmatprep.subr.bf16.mxu0 %v502
  %822 = vmatpush1.bf16.msra.mxu0 %v501
  %823 = vmatprep.subr.bf16.mxu0 %v498
  %824 = vmatpush1.bf16.msra.mxu0 %v497
  %825 = vmatprep.subr.bf16.mxu0 %v494
  %826 = vmatpush1.bf16.msra.mxu0 %v493
  %827 = vmatprep.subr.bf16.mxu0 %v490
  %828 = vmatpush1.bf16.msra.mxu0 %v489
  %829 = vmatprep.subr.bf16.mxu0 %v486
  %830 = vmatpush1.bf16.msra.mxu0 %v485
  %831 = vmatprep.subr.bf16.mxu0 %v482
  %832 = vmatpush1.bf16.msra.mxu0 %v481
  %833 = vmatprep.subr.bf16.mxu0 %v478
  %834 = vmatpush1.bf16.msra.mxu0 %v477
  %835 = vmatprep.subr.bf16.mxu0 0
  %836 = vmatpush2.bf16.msra.mxu0 0
  %837 = vmatprep.subr.bf16.mxu0 0
  %838 = vmatpush2.bf16.msra.mxu0 0
  %839 = vmatprep.subr.bf16.mxu0 0
  %840 = vmatpush2.bf16.msra.mxu0 0
  %841 = vmatprep.subr.bf16.mxu0 0
  %842 = vmatpush2.bf16.msra.mxu0 0
  %843 = vmatprep.subr.bf16.mxu0 0
  %844 = vmatpush2.bf16.msra.mxu0 0
  %845 = vmatprep.subr.bf16.mxu0 0
  %846 = vmatpush2.bf16.msra.mxu0 0
  %847 = vmatprep.subr.bf16.mxu0 0
  %848 = vmatpush2.bf16.msra.mxu0 0
  %849 = vmatprep.subr.bf16.mxu0 0
  %850 = vmatpush2.bf16.msra.mxu0 0
  %851 = vmatprep.mubr.bf16.mxu0 0
  %852 = vmatmul.mubr.bf16.gmra.mxu0 %v777
  %v853 = vpop.f32.mrf.mxu0
  %v854 = vadd.f32 0.0, %v853
  %v855 = vpop.f32.mrf.mxu0
  %v856 = vadd.f32 0.0, %v855
  %v857 = vpop.f32.mrf.mxu0
  %v858 = vpop.f32.mrf.mxu0
  %859 = vdwg.mxu0
  %v860 = vadd.f32 %v773, %v813
  %v861 = vadd.f32 %v774, %v815
  %v862 = vadd.f32 %v775, %v854
  %v863 = vadd.f32 %v776, %v856
  %v864 = vxor.u32 %v860, 2147483648
  %v865 = vxor.u32 %v861, 2147483648
  %v866 = vxor.u32 %v862, 2147483648
  %v867 = vmul.f32 %v864, 1.442695
  %v868 = vpow.pop %v867
  %v869 = vmul.f32 %v865, 1.442695
  %v870 = vpow.pop %v869
  %v871 = vmul.f32 %v866, 1.442695
  %v872 = vpow.pop %v871
  %v873 = vadd.f32 %v868, 1.0
  %v874 = vadd.f32 %v870, 1.0
  %v875 = vadd.f32 %v872, 1.0
  %v876 = vrcp.pop %v873
  %v877 = vmul.f32 1.0, %v876
  %v878 = vrcp.pop %v874
  %v879 = vmul.f32 1.0, %v878
  %v880 = vrcp.pop %v875
  %v881 = vmul.f32 1.0, %v880
  %v882 = vtanh.pop %v863
  %v883 = vmul.f32 %v879, %v765
  %v884 = vmul.f32 %v877, %v882
  %v885 = vadd.f32 %v883, %v884
  %v886 = vtanh.pop %v885
  %v887 = vmul.f32 %v881, %v886
  %s888 = scalar_lea.vmem [#allocation3], 16
  %889 = vst [vmem:[%s888] sm:$0xff] %v887
  %s890 = smul.u32 3, 4
  %s891 = smul.addr %s890, 8
  %s892 = scalar_lea.vmem [#allocation2], %s891
  %v893 = vld [vmem:[%s892] sm:$0xff]
  %v894 = vld [vmem:[%s892 + $0x8] sm:$0xff]
  %v895 = vld [vmem:[%s892 + $0x10] sm:$0xff]
  %v896 = vld [vmem:[%s892 + $0x18] sm:$0xff]
  %v897 = vpack.c.bf16 %v887, %v887
  %898 = vmatprep.subr.bf16.mxu0 %v504
  %899 = vmatpush1.bf16.msra.mxu0 %v503
  %900 = vmatprep.subr.bf16.mxu0 %v500
  %901 = vmatpush1.bf16.msra.mxu0 %v499
  %902 = vmatprep.subr.bf16.mxu0 %v496
  %903 = vmatpush1.bf16.msra.mxu0 %v495
  %904 = vmatprep.subr.bf16.mxu0 %v492
  %905 = vmatpush1.bf16.msra.mxu0 %v491
  %906 = vmatprep.subr.bf16.mxu0 %v488
  %907 = vmatpush1.bf16.msra.mxu0 %v487
  %908 = vmatprep.subr.bf16.mxu0 %v484
  %909 = vmatpush1.bf16.msra.mxu0 %v483
  %910 = vmatprep.subr.bf16.mxu0 %v480
  %911 = vmatpush1.bf16.msra.mxu0 %v479
  %912 = vmatprep.subr.bf16.mxu0 %v476
  %913 = vmatpush1.bf16.msra.mxu0 %v475
  %914 = vmatprep.subr.bf16.mxu0 0
  %915 = vmatpush2.bf16.msra.mxu0 0
  %916 = vmatprep.subr.bf16.mxu0 0
  %917 = vmatpush2.bf16.msra.mxu0 0
  %918 = vmatprep.subr.bf16.mxu0 0
  %919 = vmatpush2.bf16.msra.mxu0 0
  %920 = vmatprep.subr.bf16.mxu0 0
  %921 = vmatpush2.bf16.msra.mxu0 0
  %922 = vmatprep.subr.bf16.mxu0 0
  %923 = vmatpush2.bf16.msra.mxu0 0
  %924 = vmatprep.subr.bf16.mxu0 0
  %925 = vmatpush2.bf16.msra.mxu0 0
  %926 = vmatprep.subr.bf16.mxu0 0
  %927 = vmatpush2.bf16.msra.mxu0 0
  %928 = vmatprep.subr.bf16.mxu0 0
  %929 = vmatpush2.bf16.msra.mxu0 0
  %930 = vmatprep.mubr.bf16.mxu0 0
  %931 = vmatmul.mubr.bf16.gmra.mxu0 %v897
  %v932 = vpop.f32.mrf.mxu0
  %v933 = vadd.f32 0.0, %v932
  %v934 = vpop.f32.mrf.mxu0
  %v935 = vadd.f32 0.0, %v934
  %v936 = vpop.f32.mrf.mxu0
  %v937 = vpop.f32.mrf.mxu0
  %938 = vdwg.mxu0
  %939 = vmatprep.subr.bf16.mxu0 %v506
  %940 = vmatpush1.bf16.msra.mxu0 %v505
  %941 = vmatprep.subr.bf16.mxu0 %v502
  %942 = vmatpush1.bf16.msra.mxu0 %v501
  %943 = vmatprep.subr.bf16.mxu0 %v498
  %944 = vmatpush1.bf16.msra.mxu0 %v497
  %945 = vmatprep.subr.bf16.mxu0 %v494
  %946 = vmatpush1.bf16.msra.mxu0 %v493
  %947 = vmatprep.subr.bf16.mxu0 %v490
  %948 = vmatpush1.bf16.msra.mxu0 %v489
  %949 = vmatprep.subr.bf16.mxu0 %v486
  %950 = vmatpush1.bf16.msra.mxu0 %v485
  %951 = vmatprep.subr.bf16.mxu0 %v482
  %952 = vmatpush1.bf16.msra.mxu0 %v481
  %953 = vmatprep.subr.bf16.mxu0 %v478
  %954 = vmatpush1.bf16.msra.mxu0 %v477
  %955 = vmatprep.subr.bf16.mxu0 0
  %956 = vmatpush2.bf16.msra.mxu0 0
  %957 = vmatprep.subr.bf16.mxu0 0
  %958 = vmatpush2.bf16.msra.mxu0 0
  %959 = vmatprep.subr.bf16.mxu0 0
  %960 = vmatpush2.bf16.msra.mxu0 0
  %961 = vmatprep.subr.bf16.mxu0 0
  %962 = vmatpush2.bf16.msra.mxu0 0
  %963 = vmatprep.subr.bf16.mxu0 0
  %964 = vmatpush2.bf16.msra.mxu0 0
  %965 = vmatprep.subr.bf16.mxu0 0
  %966 = vmatpush2.bf16.msra.mxu0 0
  %967 = vmatprep.subr.bf16.mxu0 0
  %968 = vmatpush2.bf16.msra.mxu0 0
  %969 = vmatprep.subr.bf16.mxu0 0
  %970 = vmatpush2.bf16.msra.mxu0 0
  %971 = vmatprep.mubr.bf16.mxu0 0
  %972 = vmatmul.mubr.bf16.gmra.mxu0 %v897
  %v973 = vpop.f32.mrf.mxu0
  %v974 = vadd.f32 0.0, %v973
  %v975 = vpop.f32.mrf.mxu0
  %v976 = vadd.f32 0.0, %v975
  %v977 = vpop.f32.mrf.mxu0
  %v978 = vpop.f32.mrf.mxu0
  %979 = vdwg.mxu0
  %v980 = vadd.f32 %v893, %v933
  %v981 = vadd.f32 %v894, %v935
  %v982 = vadd.f32 %v895, %v974
  %v983 = vadd.f32 %v896, %v976
  %v984 = vxor.u32 %v980, 2147483648
  %v985 = vxor.u32 %v981, 2147483648
  %v986 = vxor.u32 %v982, 2147483648
  %v987 = vmul.f32 %v984, 1.442695
  %v988 = vpow.pop %v987
  %v989 = vmul.f32 %v985, 1.442695
  %v990 = vpow.pop %v989
  %v991 = vmul.f32 %v986, 1.442695
  %v992 = vpow.pop %v991
  %v993 = vadd.f32 %v988, 1.0
  %v994 = vadd.f32 %v990, 1.0
  %v995 = vadd.f32 %v992, 1.0
  %v996 = vrcp.pop %v993
  %v997 = vmul.f32 1.0, %v996
  %v998 = vrcp.pop %v994
  %v999 = vmul.f32 1.0, %v998
  %v1000 = vrcp.pop %v995
  %v1001 = vmul.f32 1.0, %v1000
  %v1002 = vtanh.pop %v983
  %v1003 = vmul.f32 %v999, %v885
  %v1004 = vmul.f32 %v997, %v1002
  %v1005 = vadd.f32 %v1003, %v1004
  %v1006 = vtanh.pop %v1005
  %v1007 = vmul.f32 %v1001, %v1006
  %s1008 = scalar_lea.vmem [#allocation3], 24
  %1009 = vst [vmem:[%s1008] sm:$0xff] %v1007
  %s1010 = smul.u32 4, 4
  %s1011 = smul.addr %s1010, 8
  %s1012 = scalar_lea.vmem [#allocation2], %s1011
  %v1013 = vld [vmem:[%s1012] sm:$0xff]
  %v1014 = vld [vmem:[%s1012 + $0x8] sm:$0xff]
  %v1015 = vld [vmem:[%s1012 + $0x10] sm:$0xff]
  %v1016 = vld [vmem:[%s1012 + $0x18] sm:$0xff]
  %v1017 = vpack.c.bf16 %v1007, %v1007
  %1018 = vmatprep.subr.bf16.mxu0 %v504
  %1019 = vmatpush1.bf16.msra.mxu0 %v503
  %1020 = vmatprep.subr.bf16.mxu0 %v500
  %1021 = vmatpush1.bf16.msra.mxu0 %v499
  %1022 = vmatprep.subr.bf16.mxu0 %v496
  %1023 = vmatpush1.bf16.msra.mxu0 %v495
  %1024 = vmatprep.subr.bf16.mxu0 %v492
  %1025 = vmatpush1.bf16.msra.mxu0 %v491
  %1026 = vmatprep.subr.bf16.mxu0 %v488
  %1027 = vmatpush1.bf16.msra.mxu0 %v487
  %1028 = vmatprep.subr.bf16.mxu0 %v484
  %1029 = vmatpush1.bf16.msra.mxu0 %v483
  %1030 = vmatprep.subr.bf16.mxu0 %v480
  %1031 = vmatpush1.bf16.msra.mxu0 %v479
  %1032 = vmatprep.subr.bf16.mxu0 %v476
  %1033 = vmatpush1.bf16.msra.mxu0 %v475
  %1034 = vmatprep.subr.bf16.mxu0 0
  %1035 = vmatpush2.bf16.msra.mxu0 0
  %1036 = vmatprep.subr.bf16.mxu0 0
  %1037 = vmatpush2.bf16.msra.mxu0 0
  %1038 = vmatprep.subr.bf16.mxu0 0
  %1039 = vmatpush2.bf16.msra.mxu0 0
  %1040 = vmatprep.subr.bf16.mxu0 0
  %1041 = vmatpush2.bf16.msra.mxu0 0
  %1042 = vmatprep.subr.bf16.mxu0 0
  %1043 = vmatpush2.bf16.msra.mxu0 0
  %1044 = vmatprep.subr.bf16.mxu0 0
  %1045 = vmatpush2.bf16.msra.mxu0 0
  %1046 = vmatprep.subr.bf16.mxu0 0
  %1047 = vmatpush2.bf16.msra.mxu0 0
  %1048 = vmatprep.subr.bf16.mxu0 0
  %1049 = vmatpush2.bf16.msra.mxu0 0
  %1050 = vmatprep.mubr.bf16.mxu0 0
  %1051 = vmatmul.mubr.bf16.gmra.mxu0 %v1017
  %v1052 = vpop.f32.mrf.mxu0
  %v1053 = vadd.f32 0.0, %v1052
  %v1054 = vpop.f32.mrf.mxu0
  %v1055 = vadd.f32 0.0, %v1054
  %v1056 = vpop.f32.mrf.mxu0
  %v1057 = vpop.f32.mrf.mxu0
  %1058 = vdwg.mxu0
  %1059 = vmatprep.subr.bf16.mxu0 %v506
  %1060 = vmatpush1.bf16.msra.mxu0 %v505
  %1061 = vmatprep.subr.bf16.mxu0 %v502
  %1062 = vmatpush1.bf16.msra.mxu0 %v501
  %1063 = vmatprep.subr.bf16.mxu0 %v498
  %1064 = vmatpush1.bf16.msra.mxu0 %v497
  %1065 = vmatprep.subr.bf16.mxu0 %v494
  %1066 = vmatpush1.bf16.msra.mxu0 %v493
  %1067 = vmatprep.subr.bf16.mxu0 %v490
  %1068 = vmatpush1.bf16.msra.mxu0 %v489
  %1069 = vmatprep.subr.bf16.mxu0 %v486
  %1070 = vmatpush1.bf16.msra.mxu0 %v485
  %1071 = vmatprep.subr.bf16.mxu0 %v482
  %1072 = vmatpush1.bf16.msra.mxu0 %v481
  %1073 = vmatprep.subr.bf16.mxu0 %v478
  %1074 = vmatpush1.bf16.msra.mxu0 %v477
  %1075 = vmatprep.subr.bf16.mxu0 0
  %1076 = vmatpush2.bf16.msra.mxu0 0
  %1077 = vmatprep.subr.bf16.mxu0 0
  %1078 = vmatpush2.bf16.msra.mxu0 0
  %1079 = vmatprep.subr.bf16.mxu0 0
  %1080 = vmatpush2.bf16.msra.mxu0 0
  %1081 = vmatprep.subr.bf16.mxu0 0
  %1082 = vmatpush2.bf16.msra.mxu0 0
  %1083 = vmatprep.subr.bf16.mxu0 0
  %1084 = vmatpush2.bf16.msra.mxu0 0
  %1085 = vmatprep.subr.bf16.mxu0 0
  %1086 = vmatpush2.bf16.msra.mxu0 0
  %1087 = vmatprep.subr.bf16.mxu0 0
  %1088 = vmatpush2.bf16.msra.mxu0 0
  %1089 = vmatprep.subr.bf16.mxu0 0
  %1090 = vmatpush2.bf16.msra.mxu0 0
  %1091 = vmatprep.mubr.bf16.mxu0 0
  %1092 = vmatmul.mubr.bf16.gmra.mxu0 %v1017
  %v1093 = vpop.f32.mrf.mxu0
  %v1094 = vadd.f32 0.0, %v1093
  %v1095 = vpop.f32.mrf.mxu0
  %v1096 = vadd.f32 0.0, %v1095
  %v1097 = vpop.f32.mrf.mxu0
  %v1098 = vpop.f32.mrf.mxu0
  %1099 = vdwg.mxu0
  %v1100 = vadd.f32 %v1013, %v1053
  %v1101 = vadd.f32 %v1014, %v1055
  %v1102 = vadd.f32 %v1015, %v1094
  %v1103 = vadd.f32 %v1016, %v1096
  %v1104 = vxor.u32 %v1100, 2147483648
  %v1105 = vxor.u32 %v1101, 2147483648
  %v1106 = vxor.u32 %v1102, 2147483648
  %v1107 = vmul.f32 %v1104, 1.442695
  %v1108 = vpow.pop %v1107
  %v1109 = vmul.f32 %v1105, 1.442695
  %v1110 = vpow.pop %v1109
  %v1111 = vmul.f32 %v1106, 1.442695
  %v1112 = vpow.pop %v1111
  %v1113 = vadd.f32 %v1108, 1.0
  %v1114 = vadd.f32 %v1110, 1.0
  %v1115 = vadd.f32 %v1112, 1.0
  %v1116 = vrcp.pop %v1113
  %v1117 = vmul.f32 1.0, %v1116
  %v1118 = vrcp.pop %v1114
  %v1119 = vmul.f32 1.0, %v1118
  %v1120 = vrcp.pop %v1115
  %v1121 = vmul.f32 1.0, %v1120
  %v1122 = vtanh.pop %v1103
  %v1123 = vmul.f32 %v1119, %v1005
  %v1124 = vmul.f32 %v1117, %v1122
  %v1125 = vadd.f32 %v1123, %v1124
  %v1126 = vtanh.pop %v1125
  %v1127 = vmul.f32 %v1121, %v1126
  %s1128 = scalar_lea.vmem [#allocation3], 32
  %1129 = vst [vmem:[%s1128] sm:$0xff] %v1127
  %s1130 = smul.u32 5, 4
  %s1131 = smul.addr %s1130, 8
  %s1132 = scalar_lea.vmem [#allocation2], %s1131
  %v1133 = vld [vmem:[%s1132] sm:$0xff]
  %v1134 = vld [vmem:[%s1132 + $0x8] sm:$0xff]
  %v1135 = vld [vmem:[%s1132 + $0x10] sm:$0xff]
  %v1136 = vld [vmem:[%s1132 + $0x18] sm:$0xff]
  %v1137 = vpack.c.bf16 %v1127, %v1127
  %1138 = vmatprep.subr.bf16.mxu0 %v504
  %1139 = vmatpush1.bf16.msra.mxu0 %v503
  %1140 = vmatprep.subr.bf16.mxu0 %v500
  %1141 = vmatpush1.bf16.msra.mxu0 %v499
  %1142 = vmatprep.subr.bf16.mxu0 %v496
  %1143 = vmatpush1.bf16.msra.mxu0 %v495
  %1144 = vmatprep.subr.bf16.mxu0 %v492
  %1145 = vmatpush1.bf16.msra.mxu0 %v491
  %1146 = vmatprep.subr.bf16.mxu0 %v488
  %1147 = vmatpush1.bf16.msra.mxu0 %v487
  %1148 = vmatprep.subr.bf16.mxu0 %v484
  %1149 = vmatpush1.bf16.msra.mxu0 %v483
  %1150 = vmatprep.subr.bf16.mxu0 %v480
  %1151 = vmatpush1.bf16.msra.mxu0 %v479
  %1152 = vmatprep.subr.bf16.mxu0 %v476
  %1153 = vmatpush1.bf16.msra.mxu0 %v475
  %1154 = vmatprep.subr.bf16.mxu0 0
  %1155 = vmatpush2.bf16.msra.mxu0 0
  %1156 = vmatprep.subr.bf16.mxu0 0
  %1157 = vmatpush2.bf16.msra.mxu0 0
  %1158 = vmatprep.subr.bf16.mxu0 0
  %1159 = vmatpush2.bf16.msra.mxu0 0
  %1160 = vmatprep.subr.bf16.mxu0 0
  %1161 = vmatpush2.bf16.msra.mxu0 0
  %1162 = vmatprep.subr.bf16.mxu0 0
  %1163 = vmatpush2.bf16.msra.mxu0 0
  %1164 = vmatprep.subr.bf16.mxu0 0
  %1165 = vmatpush2.bf16.msra.mxu0 0
  %1166 = vmatprep.subr.bf16.mxu0 0
  %1167 = vmatpush2.bf16.msra.mxu0 0
  %1168 = vmatprep.subr.bf16.mxu0 0
  %1169 = vmatpush2.bf16.msra.mxu0 0
  %1170 = vmatprep.mubr.bf16.mxu0 0
  %1171 = vmatmul.mubr.bf16.gmra.mxu0 %v1137
  %v1172 = vpop.f32.mrf.mxu0
  %v1173 = vadd.f32 0.0, %v1172
  %v1174 = vpop.f32.mrf.mxu0
  %v1175 = vadd.f32 0.0, %v1174
  %v1176 = vpop.f32.mrf.mxu0
  %v1177 = vpop.f32.mrf.mxu0
  %1178 = vdwg.mxu0
  %1179 = vmatprep.subr.bf16.mxu0 %v506
  %1180 = vmatpush1.bf16.msra.mxu0 %v505
  %1181 = vmatprep.subr.bf16.mxu0 %v502
  %1182 = vmatpush1.bf16.msra.mxu0 %v501
  %1183 = vmatprep.subr.bf16.mxu0 %v498
  %1184 = vmatpush1.bf16.msra.mxu0 %v497
  %1185 = vmatprep.subr.bf16.mxu0 %v494
  %1186 = vmatpush1.bf16.msra.mxu0 %v493
  %1187 = vmatprep.subr.bf16.mxu0 %v490
  %1188 = vmatpush1.bf16.msra.mxu0 %v489
  %1189 = vmatprep.subr.bf16.mxu0 %v486
  %1190 = vmatpush1.bf16.msra.mxu0 %v485
  %1191 = vmatprep.subr.bf16.mxu0 %v482
  %1192 = vmatpush1.bf16.msra.mxu0 %v481
  %1193 = vmatprep.subr.bf16.mxu0 %v478
  %1194 = vmatpush1.bf16.msra.mxu0 %v477
  %1195 = vmatprep.subr.bf16.mxu0 0
  %1196 = vmatpush2.bf16.msra.mxu0 0
  %1197 = vmatprep.subr.bf16.mxu0 0
  %1198 = vmatpush2.bf16.msra.mxu0 0
  %1199 = vmatprep.subr.bf16.mxu0 0
  %1200 = vmatpush2.bf16.msra.mxu0 0
  %1201 = vmatprep.subr.bf16.mxu0 0
  %1202 = vmatpush2.bf16.msra.mxu0 0
  %1203 = vmatprep.subr.bf16.mxu0 0
  %1204 = vmatpush2.bf16.msra.mxu0 0
  %1205 = vmatprep.subr.bf16.mxu0 0
  %1206 = vmatpush2.bf16.msra.mxu0 0
  %1207 = vmatprep.subr.bf16.mxu0 0
  %1208 = vmatpush2.bf16.msra.mxu0 0
  %1209 = vmatprep.subr.bf16.mxu0 0
  %1210 = vmatpush2.bf16.msra.mxu0 0
  %1211 = vmatprep.mubr.bf16.mxu0 0
  %1212 = vmatmul.mubr.bf16.gmra.mxu0 %v1137
  %v1213 = vpop.f32.mrf.mxu0
  %v1214 = vadd.f32 0.0, %v1213
  %v1215 = vpop.f32.mrf.mxu0
  %v1216 = vadd.f32 0.0, %v1215
  %v1217 = vpop.f32.mrf.mxu0
  %v1218 = vpop.f32.mrf.mxu0
  %1219 = vdwg.mxu0
  %v1220 = vadd.f32 %v1133, %v1173
  %v1221 = vadd.f32 %v1134, %v1175
  %v1222 = vadd.f32 %v1135, %v1214
  %v1223 = vadd.f32 %v1136, %v1216
  %v1224 = vxor.u32 %v1220, 2147483648
  %v1225 = vxor.u32 %v1221, 2147483648
  %v1226 = vxor.u32 %v1222, 2147483648
  %v1227 = vmul.f32 %v1224, 1.442695
  %v1228 = vpow.pop %v1227
  %v1229 = vmul.f32 %v1225, 1.442695
  %v1230 = vpow.pop %v1229
  %v1231 = vmul.f32 %v1226, 1.442695
  %v1232 = vpow.pop %v1231
  %v1233 = vadd.f32 %v1228, 1.0
  %v1234 = vadd.f32 %v1230, 1.0
  %v1235 = vadd.f32 %v1232, 1.0
  %v1236 = vrcp.pop %v1233
  %v1237 = vmul.f32 1.0, %v1236
  %v1238 = vrcp.pop %v1234
  %v1239 = vmul.f32 1.0, %v1238
  %v1240 = vrcp.pop %v1235
  %v1241 = vmul.f32 1.0, %v1240
  %v1242 = vtanh.pop %v1223
  %v1243 = vmul.f32 %v1239, %v1125
  %v1244 = vmul.f32 %v1237, %v1242
  %v1245 = vadd.f32 %v1243, %v1244
  %v1246 = vtanh.pop %v1245
  %v1247 = vmul.f32 %v1241, %v1246
  %s1248 = scalar_lea.vmem [#allocation3], 40
  %1249 = vst [vmem:[%s1248] sm:$0xff] %v1247
  %s1250 = smul.u32 6, 4
  %s1251 = smul.addr %s1250, 8
  %s1252 = scalar_lea.vmem [#allocation2], %s1251
  %v1253 = vld [vmem:[%s1252] sm:$0xff]
  %v1254 = vld [vmem:[%s1252 + $0x8] sm:$0xff]
  %v1255 = vld [vmem:[%s1252 + $0x10] sm:$0xff]
  %v1256 = vld [vmem:[%s1252 + $0x18] sm:$0xff]
  %v1257 = vpack.c.bf16 %v1247, %v1247
  %1258 = vmatprep.subr.bf16.mxu0 %v504
  %1259 = vmatpush1.bf16.msra.mxu0 %v503
  %1260 = vmatprep.subr.bf16.mxu0 %v500
  %1261 = vmatpush1.bf16.msra.mxu0 %v499
  %1262 = vmatprep.subr.bf16.mxu0 %v496
  %1263 = vmatpush1.bf16.msra.mxu0 %v495
  %1264 = vmatprep.subr.bf16.mxu0 %v492
  %1265 = vmatpush1.bf16.msra.mxu0 %v491
  %1266 = vmatprep.subr.bf16.mxu0 %v488
  %1267 = vmatpush1.bf16.msra.mxu0 %v487
  %1268 = vmatprep.subr.bf16.mxu0 %v484
  %1269 = vmatpush1.bf16.msra.mxu0 %v483
  %1270 = vmatprep.subr.bf16.mxu0 %v480
  %1271 = vmatpush1.bf16.msra.mxu0 %v479
  %1272 = vmatprep.subr.bf16.mxu0 %v476
  %1273 = vmatpush1.bf16.msra.mxu0 %v475
  %1274 = vmatprep.subr.bf16.mxu0 0
  %1275 = vmatpush2.bf16.msra.mxu0 0
  %1276 = vmatprep.subr.bf16.mxu0 0
  %1277 = vmatpush2.bf16.msra.mxu0 0
  %1278 = vmatprep.subr.bf16.mxu0 0
  %1279 = vmatpush2.bf16.msra.mxu0 0
  %1280 = vmatprep.subr.bf16.mxu0 0
  %1281 = vmatpush2.bf16.msra.mxu0 0
  %1282 = vmatprep.subr.bf16.mxu0 0
  %1283 = vmatpush2.bf16.msra.mxu0 0
  %1284 = vmatprep.subr.bf16.mxu0 0
  %1285 = vmatpush2.bf16.msra.mxu0 0
  %1286 = vmatprep.subr.bf16.mxu0 0
  %1287 = vmatpush2.bf16.msra.mxu0 0
  %1288 = vmatprep.subr.bf16.mxu0 0
  %1289 = vmatpush2.bf16.msra.mxu0 0
  %1290 = vmatprep.mubr.bf16.mxu0 0
  %1291 = vmatmul.mubr.bf16.gmra.mxu0 %v1257
  %v1292 = vpop.f32.mrf.mxu0
  %v1293 = vadd.f32 0.0, %v1292
  %v1294 = vpop.f32.mrf.mxu0
  %v1295 = vadd.f32 0.0, %v1294
  %v1296 = vpop.f32.mrf.mxu0
  %v1297 = vpop.f32.mrf.mxu0
  %1298 = vdwg.mxu0
  %1299 = vmatprep.subr.bf16.mxu0 %v506
  %1300 = vmatpush1.bf16.msra.mxu0 %v505
  %1301 = vmatprep.subr.bf16.mxu0 %v502
  %1302 = vmatpush1.bf16.msra.mxu0 %v501
  %1303 = vmatprep.subr.bf16.mxu0 %v498
  %1304 = vmatpush1.bf16.msra.mxu0 %v497
  %1305 = vmatprep.subr.bf16.mxu0 %v494
  %1306 = vmatpush1.bf16.msra.mxu0 %v493
  %1307 = vmatprep.subr.bf16.mxu0 %v490
  %1308 = vmatpush1.bf16.msra.mxu0 %v489
  %1309 = vmatprep.subr.bf16.mxu0 %v486
  %1310 = vmatpush1.bf16.msra.mxu0 %v485
  %1311 = vmatprep.subr.bf16.mxu0 %v482
  %1312 = vmatpush1.bf16.msra.mxu0 %v481
  %1313 = vmatprep.subr.bf16.mxu0 %v478
  %1314 = vmatpush1.bf16.msra.mxu0 %v477
  %1315 = vmatprep.subr.bf16.mxu0 0
  %1316 = vmatpush2.bf16.msra.mxu0 0
  %1317 = vmatprep.subr.bf16.mxu0 0
  %1318 = vmatpush2.bf16.msra.mxu0 0
  %1319 = vmatprep.subr.bf16.mxu0 0
  %1320 = vmatpush2.bf16.msra.mxu0 0
  %1321 = vmatprep.subr.bf16.mxu0 0
  %1322 = vmatpush2.bf16.msra.mxu0 0
  %1323 = vmatprep.subr.bf16.mxu0 0
  %1324 = vmatpush2.bf16.msra.mxu0 0
  %1325 = vmatprep.subr.bf16.mxu0 0
  %1326 = vmatpush2.bf16.msra.mxu0 0
  %1327 = vmatprep.subr.bf16.mxu0 0
  %1328 = vmatpush2.bf16.msra.mxu0 0
  %1329 = vmatprep.subr.bf16.mxu0 0
  %1330 = vmatpush2.bf16.msra.mxu0 0
  %1331 = vmatprep.mubr.bf16.mxu0 0
  %1332 = vmatmul.mubr.bf16.gmra.mxu0 %v1257
  %v1333 = vpop.f32.mrf.mxu0
  %v1334 = vadd.f32 0.0, %v1333
  %v1335 = vpop.f32.mrf.mxu0
  %v1336 = vadd.f32 0.0, %v1335
  %v1337 = vpop.f32.mrf.mxu0
  %v1338 = vpop.f32.mrf.mxu0
  %1339 = vdwg.mxu0
  %v1340 = vadd.f32 %v1253, %v1293
  %v1341 = vadd.f32 %v1254, %v1295
  %v1342 = vadd.f32 %v1255, %v1334
  %v1343 = vadd.f32 %v1256, %v1336
  %v1344 = vxor.u32 %v1340, 2147483648
  %v1345 = vxor.u32 %v1341, 2147483648
  %v1346 = vxor.u32 %v1342, 2147483648
  %v1347 = vmul.f32 %v1344, 1.442695
  %v1348 = vpow.pop %v1347
  %v1349 = vmul.f32 %v1345, 1.442695
  %v1350 = vpow.pop %v1349
  %v1351 = vmul.f32 %v1346, 1.442695
  %v1352 = vpow.pop %v1351
  %v1353 = vadd.f32 %v1348, 1.0
  %v1354 = vadd.f32 %v1350, 1.0
  %v1355 = vadd.f32 %v1352, 1.0
  %v1356 = vrcp.pop %v1353
  %v1357 = vmul.f32 1.0, %v1356
  %v1358 = vrcp.pop %v1354
  %v1359 = vmul.f32 1.0, %v1358
  %v1360 = vrcp.pop %v1355
  %v1361 = vmul.f32 1.0, %v1360
  %v1362 = vtanh.pop %v1343
  %v1363 = vmul.f32 %v1359, %v1245
  %v1364 = vmul.f32 %v1357, %v1362
  %v1365 = vadd.f32 %v1363, %v1364
  %v1366 = vtanh.pop %v1365
  %v1367 = vmul.f32 %v1361, %v1366
  %s1368 = scalar_lea.vmem [#allocation3], 48
  %1369 = vst [vmem:[%s1368] sm:$0xff] %v1367
  %s1370 = smul.u32 7, 4
  %s1371 = smul.addr %s1370, 8
  %s1372 = scalar_lea.vmem [#allocation2], %s1371
  %v1373 = vld [vmem:[%s1372] sm:$0xff]
  %v1374 = vld [vmem:[%s1372 + $0x8] sm:$0xff]
  %v1375 = vld [vmem:[%s1372 + $0x10] sm:$0xff]
  %v1376 = vld [vmem:[%s1372 + $0x18] sm:$0xff]
  %v1377 = vpack.c.bf16 %v1367, %v1367
  %1378 = vmatprep.subr.bf16.mxu0 %v504
  %1379 = vmatpush1.bf16.msra.mxu0 %v503
  %1380 = vmatprep.subr.bf16.mxu0 %v500
  %1381 = vmatpush1.bf16.msra.mxu0 %v499
  %1382 = vmatprep.subr.bf16.mxu0 %v496
  %1383 = vmatpush1.bf16.msra.mxu0 %v495
  %1384 = vmatprep.subr.bf16.mxu0 %v492
  %1385 = vmatpush1.bf16.msra.mxu0 %v491
  %1386 = vmatprep.subr.bf16.mxu0 %v488
  %1387 = vmatpush1.bf16.msra.mxu0 %v487
  %1388 = vmatprep.subr.bf16.mxu0 %v484
  %1389 = vmatpush1.bf16.msra.mxu0 %v483
  %1390 = vmatprep.subr.bf16.mxu0 %v480
  %1391 = vmatpush1.bf16.msra.mxu0 %v479
  %1392 = vmatprep.subr.bf16.mxu0 %v476
  %1393 = vmatpush1.bf16.msra.mxu0 %v475
  %1394 = vmatprep.subr.bf16.mxu0 0
  %1395 = vmatpush2.bf16.msra.mxu0 0
  %1396 = vmatprep.subr.bf16.mxu0 0
  %1397 = vmatpush2.bf16.msra.mxu0 0
  %1398 = vmatprep.subr.bf16.mxu0 0
  %1399 = vmatpush2.bf16.msra.mxu0 0
  %1400 = vmatprep.subr.bf16.mxu0 0
  %1401 = vmatpush2.bf16.msra.mxu0 0
  %1402 = vmatprep.subr.bf16.mxu0 0
  %1403 = vmatpush2.bf16.msra.mxu0 0
  %1404 = vmatprep.subr.bf16.mxu0 0
  %1405 = vmatpush2.bf16.msra.mxu0 0
  %1406 = vmatprep.subr.bf16.mxu0 0
  %1407 = vmatpush2.bf16.msra.mxu0 0
  %1408 = vmatprep.subr.bf16.mxu0 0
  %1409 = vmatpush2.bf16.msra.mxu0 0
  %1410 = vmatprep.mubr.bf16.mxu0 0
  %1411 = vmatmul.mubr.bf16.gmra.mxu0 %v1377
  %v1412 = vpop.f32.mrf.mxu0
  %v1413 = vadd.f32 0.0, %v1412
  %v1414 = vpop.f32.mrf.mxu0
  %v1415 = vadd.f32 0.0, %v1414
  %v1416 = vpop.f32.mrf.mxu0
  %v1417 = vpop.f32.mrf.mxu0
  %1418 = vdwg.mxu0
  %1419 = vmatprep.subr.bf16.mxu0 %v506
  %1420 = vmatpush1.bf16.msra.mxu0 %v505
  %1421 = vmatprep.subr.bf16.mxu0 %v502
  %1422 = vmatpush1.bf16.msra.mxu0 %v501
  %1423 = vmatprep.subr.bf16.mxu0 %v498
  %1424 = vmatpush1.bf16.msra.mxu0 %v497
  %1425 = vmatprep.subr.bf16.mxu0 %v494
  %1426 = vmatpush1.bf16.msra.mxu0 %v493
  %1427 = vmatprep.subr.bf16.mxu0 %v490
  %1428 = vmatpush1.bf16.msra.mxu0 %v489
  %1429 = vmatprep.subr.bf16.mxu0 %v486
  %1430 = vmatpush1.bf16.msra.mxu0 %v485
  %1431 = vmatprep.subr.bf16.mxu0 %v482
  %1432 = vmatpush1.bf16.msra.mxu0 %v481
  %1433 = vmatprep.subr.bf16.mxu0 %v478
  %1434 = vmatpush1.bf16.msra.mxu0 %v477
  %1435 = vmatprep.subr.bf16.mxu0 0
  %1436 = vmatpush2.bf16.msra.mxu0 0
  %1437 = vmatprep.subr.bf16.mxu0 0
  %1438 = vmatpush2.bf16.msra.mxu0 0
  %1439 = vmatprep.subr.bf16.mxu0 0
  %1440 = vmatpush2.bf16.msra.mxu0 0
  %1441 = vmatprep.subr.bf16.mxu0 0
  %1442 = vmatpush2.bf16.msra.mxu0 0
  %1443 = vmatprep.subr.bf16.mxu0 0
  %1444 = vmatpush2.bf16.msra.mxu0 0
  %1445 = vmatprep.subr.bf16.mxu0 0
  %1446 = vmatpush2.bf16.msra.mxu0 0
  %1447 = vmatprep.subr.bf16.mxu0 0
  %1448 = vmatpush2.bf16.msra.mxu0 0
  %1449 = vmatprep.subr.bf16.mxu0 0
  %1450 = vmatpush2.bf16.msra.mxu0 0
  %1451 = vmatprep.mubr.bf16.mxu0 0
  %1452 = vmatmul.mubr.bf16.gmra.mxu0 %v1377
  %v1453 = vpop.f32.mrf.mxu0
  %v1454 = vadd.f32 0.0, %v1453
  %v1455 = vpop.f32.mrf.mxu0
  %v1456 = vadd.f32 0.0, %v1455
  %v1457 = vpop.f32.mrf.mxu0
  %v1458 = vpop.f32.mrf.mxu0
  %1459 = vdwg.mxu0
  %v1460 = vadd.f32 %v1373, %v1413
  %v1461 = vadd.f32 %v1374, %v1415
  %v1462 = vadd.f32 %v1375, %v1454
  %v1463 = vadd.f32 %v1376, %v1456
  %v1464 = vxor.u32 %v1460, 2147483648
  %v1465 = vxor.u32 %v1461, 2147483648
  %v1466 = vxor.u32 %v1462, 2147483648
  %v1467 = vmul.f32 %v1464, 1.442695
  %v1468 = vpow.pop %v1467
  %v1469 = vmul.f32 %v1465, 1.442695
  %v1470 = vpow.pop %v1469
  %v1471 = vmul.f32 %v1466, 1.442695
  %v1472 = vpow.pop %v1471
  %v1473 = vadd.f32 %v1468, 1.0
  %v1474 = vadd.f32 %v1470, 1.0
  %v1475 = vadd.f32 %v1472, 1.0
  %v1476 = vrcp.pop %v1473
  %v1477 = vmul.f32 1.0, %v1476
  %v1478 = vrcp.pop %v1474
  %v1479 = vmul.f32 1.0, %v1478
  %v1480 = vrcp.pop %v1475
  %v1481 = vmul.f32 1.0, %v1480
  %v1482 = vtanh.pop %v1463
  %v1483 = vmul.f32 %v1479, %v1365
  %v1484 = vmul.f32 %v1477, %v1482
  %v1485 = vadd.f32 %v1483, %v1484
  %v1486 = vtanh.pop %v1485
  %v1487 = vmul.f32 %v1481, %v1486
  %s1488 = scalar_lea.vmem [#allocation3], 56
  %1489 = vst [vmem:[%s1488] sm:$0xff] %v1487
  %s1490 = smul.u32 8, 4
  %s1491 = smul.addr %s1490, 8
  %s1492 = scalar_lea.vmem [#allocation2], %s1491
  %v1493 = vld [vmem:[%s1492] sm:$0xff]
  %v1494 = vld [vmem:[%s1492 + $0x8] sm:$0xff]
  %v1495 = vld [vmem:[%s1492 + $0x10] sm:$0xff]
  %v1496 = vld [vmem:[%s1492 + $0x18] sm:$0xff]
  %v1497 = vpack.c.bf16 %v1487, %v1487
  %1498 = vmatprep.subr.bf16.mxu0 %v504
  %1499 = vmatpush1.bf16.msra.mxu0 %v503
  %1500 = vmatprep.subr.bf16.mxu0 %v500
  %1501 = vmatpush1.bf16.msra.mxu0 %v499
  %1502 = vmatprep.subr.bf16.mxu0 %v496
  %1503 = vmatpush1.bf16.msra.mxu0 %v495
  %1504 = vmatprep.subr.bf16.mxu0 %v492
  %1505 = vmatpush1.bf16.msra.mxu0 %v491
  %1506 = vmatprep.subr.bf16.mxu0 %v488
  %1507 = vmatpush1.bf16.msra.mxu0 %v487
  %1508 = vmatprep.subr.bf16.mxu0 %v484
  %1509 = vmatpush1.bf16.msra.mxu0 %v483
  %1510 = vmatprep.subr.bf16.mxu0 %v480
  %1511 = vmatpush1.bf16.msra.mxu0 %v479
  %1512 = vmatprep.subr.bf16.mxu0 %v476
  %1513 = vmatpush1.bf16.msra.mxu0 %v475
  %1514 = vmatprep.subr.bf16.mxu0 0
  %1515 = vmatpush2.bf16.msra.mxu0 0
  %1516 = vmatprep.subr.bf16.mxu0 0
  %1517 = vmatpush2.bf16.msra.mxu0 0
  %1518 = vmatprep.subr.bf16.mxu0 0
  %1519 = vmatpush2.bf16.msra.mxu0 0
  %1520 = vmatprep.subr.bf16.mxu0 0
  %1521 = vmatpush2.bf16.msra.mxu0 0
  %1522 = vmatprep.subr.bf16.mxu0 0
  %1523 = vmatpush2.bf16.msra.mxu0 0
  %1524 = vmatprep.subr.bf16.mxu0 0
  %1525 = vmatpush2.bf16.msra.mxu0 0
  %1526 = vmatprep.subr.bf16.mxu0 0
  %1527 = vmatpush2.bf16.msra.mxu0 0
  %1528 = vmatprep.subr.bf16.mxu0 0
  %1529 = vmatpush2.bf16.msra.mxu0 0
  %1530 = vmatprep.mubr.bf16.mxu0 0
  %1531 = vmatmul.mubr.bf16.gmra.mxu0 %v1497
  %v1532 = vpop.f32.mrf.mxu0
  %v1533 = vadd.f32 0.0, %v1532
  %v1534 = vpop.f32.mrf.mxu0
  %v1535 = vadd.f32 0.0, %v1534
  %v1536 = vpop.f32.mrf.mxu0
  %v1537 = vpop.f32.mrf.mxu0
  %1538 = vdwg.mxu0
  %1539 = vmatprep.subr.bf16.mxu0 %v506
  %1540 = vmatpush1.bf16.msra.mxu0 %v505
  %1541 = vmatprep.subr.bf16.mxu0 %v502
  %1542 = vmatpush1.bf16.msra.mxu0 %v501
  %1543 = vmatprep.subr.bf16.mxu0 %v498
  %1544 = vmatpush1.bf16.msra.mxu0 %v497
  %1545 = vmatprep.subr.bf16.mxu0 %v494
  %1546 = vmatpush1.bf16.msra.mxu0 %v493
  %1547 = vmatprep.subr.bf16.mxu0 %v490
  %1548 = vmatpush1.bf16.msra.mxu0 %v489
  %1549 = vmatprep.subr.bf16.mxu0 %v486
  %1550 = vmatpush1.bf16.msra.mxu0 %v485
  %1551 = vmatprep.subr.bf16.mxu0 %v482
  %1552 = vmatpush1.bf16.msra.mxu0 %v481
  %1553 = vmatprep.subr.bf16.mxu0 %v478
  %1554 = vmatpush1.bf16.msra.mxu0 %v477
  %1555 = vmatprep.subr.bf16.mxu0 0
  %1556 = vmatpush2.bf16.msra.mxu0 0
  %1557 = vmatprep.subr.bf16.mxu0 0
  %1558 = vmatpush2.bf16.msra.mxu0 0
  %1559 = vmatprep.subr.bf16.mxu0 0
  %1560 = vmatpush2.bf16.msra.mxu0 0
  %1561 = vmatprep.subr.bf16.mxu0 0
  %1562 = vmatpush2.bf16.msra.mxu0 0
  %1563 = vmatprep.subr.bf16.mxu0 0
  %1564 = vmatpush2.bf16.msra.mxu0 0
  %1565 = vmatprep.subr.bf16.mxu0 0
  %1566 = vmatpush2.bf16.msra.mxu0 0
  %1567 = vmatprep.subr.bf16.mxu0 0
  %1568 = vmatpush2.bf16.msra.mxu0 0
  %1569 = vmatprep.subr.bf16.mxu0 0
  %1570 = vmatpush2.bf16.msra.mxu0 0
  %1571 = vmatprep.mubr.bf16.mxu0 0
  %1572 = vmatmul.mubr.bf16.gmra.mxu0 %v1497
  %v1573 = vpop.f32.mrf.mxu0
  %v1574 = vadd.f32 0.0, %v1573
  %v1575 = vpop.f32.mrf.mxu0
  %v1576 = vadd.f32 0.0, %v1575
  %v1577 = vpop.f32.mrf.mxu0
  %v1578 = vpop.f32.mrf.mxu0
  %1579 = vdwg.mxu0
  %v1580 = vadd.f32 %v1493, %v1533
  %v1581 = vadd.f32 %v1494, %v1535
  %v1582 = vadd.f32 %v1495, %v1574
  %v1583 = vadd.f32 %v1496, %v1576
  %v1584 = vxor.u32 %v1580, 2147483648
  %v1585 = vxor.u32 %v1581, 2147483648
  %v1586 = vxor.u32 %v1582, 2147483648
  %v1587 = vmul.f32 %v1584, 1.442695
  %v1588 = vpow.pop %v1587
  %v1589 = vmul.f32 %v1585, 1.442695
  %v1590 = vpow.pop %v1589
  %v1591 = vmul.f32 %v1586, 1.442695
  %v1592 = vpow.pop %v1591
  %v1593 = vadd.f32 %v1588, 1.0
  %v1594 = vadd.f32 %v1590, 1.0
  %v1595 = vadd.f32 %v1592, 1.0
  %v1596 = vrcp.pop %v1593
  %v1597 = vmul.f32 1.0, %v1596
  %v1598 = vrcp.pop %v1594
  %v1599 = vmul.f32 1.0, %v1598
  %v1600 = vrcp.pop %v1595
  %v1601 = vmul.f32 1.0, %v1600
  %v1602 = vtanh.pop %v1583
  %v1603 = vmul.f32 %v1599, %v1485
  %v1604 = vmul.f32 %v1597, %v1602
  %v1605 = vadd.f32 %v1603, %v1604
  %v1606 = vtanh.pop %v1605
  %v1607 = vmul.f32 %v1601, %v1606
  %s1608 = scalar_lea.vmem [#allocation3], 64
  %1609 = vst [vmem:[%s1608] sm:$0xff] %v1607
  %v1610 = vld [vmem:[#allocation3] sm:$0xff]
  %v1611 = vld [vmem:[#allocation3 + $0x8] sm:$0xff]
  %v1612 = vld [vmem:[#allocation3 + $0x10] sm:$0xff]
  %v1613 = vld [vmem:[#allocation3 + $0x18] sm:$0xff]
  %v1614 = vld [vmem:[#allocation3 + $0x20] sm:$0xff]
  %v1615 = vld [vmem:[#allocation3 + $0x28] sm:$0xff]
  %v1616 = vld [vmem:[#allocation3 + $0x30] sm:$0xff]
  %v1617 = vld [vmem:[#allocation3 + $0x38] sm:$0xff]
  %v1618 = vld [vmem:[#allocation3 + $0x40] sm:$0xff]
  %v1619 = vpack.c.bf16 %v1611, %v1610
  %v1620 = vpack.c.bf16 %v1613, %v1612
  %v1621 = vpack.c.bf16 %v1615, %v1614
  %v1622 = vpack.c.bf16 %v1617, %v1616
  %v1623 = vpack.c.bf16 %v1618, %v1618
  %v1624 = vld [vmem:[%s4] sm:$0xf]
  %v1625 = vld [vmem:[%s4 + $0x4] sm:$0xf]
  %v1626 = vld [vmem:[%s4 + $0x8] sm:$0xf]
  %v1627 = vld [vmem:[%s4 + $0xc] sm:$0xf]
  %v1628 = vld [vmem:[%s4 + $0x10] sm:$0xf]
  %v1629 = vld [vmem:[%s4 + $0x14] sm:$0xf]
  %v1630 = vld [vmem:[%s4 + $0x18] sm:$0xf]
  %v1631 = vld [vmem:[%s4 + $0x1c] sm:$0xf]
  %v1632 = vld [vmem:[%s4 + $0x20] sm:$0xf]
  %v1633 = vld [vmem:[%s4 + $0x24] sm:$0xf]
  %v1634 = vld [vmem:[%s4 + $0x28] sm:$0xf]
  %v1635 = vld [vmem:[%s4 + $0x2c] sm:$0xf]
  %v1636 = vld [vmem:[%s4 + $0x30] sm:$0xf]
  %v1637 = vld [vmem:[%s4 + $0x34] sm:$0xf]
  %v1638 = vld [vmem:[%s4 + $0x38] sm:$0xf]
  %v1639 = vld [vmem:[%s4 + $0x3c] sm:$0xf]
  %v1640 = vld [vmem:[%s5] sm:$0x1]
  %v1642 = vlaneseq
  %v1643 = vshrl.u32 %v1642, 7
  %v1644 = vsub.s32 0, %v1643
  %v1645 = vrot.slane %v1640, %v1644
  %v1663 = vunpack.c.l.b16 %v1624
  %v1664 = vunpack.c.l.b16 %v1625
  %v1665 = vunpack.c.l.b16 %v1626
  %v1666 = vunpack.c.l.b16 %v1627
  %v1667 = vunpack.c.l.b16 %v1628
  %v1668 = vunpack.c.l.b16 %v1629
  %v1669 = vunpack.c.l.b16 %v1630
  %v1670 = vunpack.c.l.b16 %v1631
  %v1671 = vunpack.c.l.b16 %v1632
  %v1672 = vunpack.c.l.b16 %v1633
  %v1673 = vunpack.c.l.b16 %v1634
  %v1674 = vunpack.c.l.b16 %v1635
  %v1675 = vunpack.c.l.b16 %v1636
  %v1676 = vunpack.c.l.b16 %v1637
  %v1677 = vunpack.c.l.b16 %v1638
  %v1678 = vunpack.c.l.b16 %v1639
  %v1679 = vpack.c.b16 %v1664, %v1663
  %v1680 = vpack.c.b16 %v1666, %v1665
  %v1681 = vpack.c.b16 %v1668, %v1667
  %v1682 = vpack.c.b16 %v1670, %v1669
  %v1683 = vpack.c.b16 %v1672, %v1671
  %v1684 = vpack.c.b16 %v1674, %v1673
  %v1685 = vpack.c.b16 %v1676, %v1675
  %v1686 = vpack.c.b16 %v1678, %v1677
  %1695 = vmatprep.subr.bf16.mxu0 0
  %1696 = vmatpush1.bf16.msra.mxu0 %v1686
  %1697 = vmatprep.subr.bf16.mxu0 0
  %1698 = vmatpush1.bf16.msra.mxu0 %v1685
  %1699 = vmatprep.subr.bf16.mxu0 0
  %1700 = vmatpush1.bf16.msra.mxu0 %v1684
  %1701 = vmatprep.subr.bf16.mxu0 0
  %1702 = vmatpush1.bf16.msra.mxu0 %v1683
  %1703 = vmatprep.subr.bf16.mxu0 0
  %1704 = vmatpush1.bf16.msra.mxu0 %v1682
  %1705 = vmatprep.subr.bf16.mxu0 0
  %1706 = vmatpush1.bf16.msra.mxu0 %v1681
  %1707 = vmatprep.subr.bf16.mxu0 0
  %1708 = vmatpush1.bf16.msra.mxu0 %v1680
  %1709 = vmatprep.subr.bf16.mxu0 0
  %1710 = vmatpush1.bf16.msra.mxu0 %v1679
  %1711 = vmatprep.subr.bf16.mxu0 0
  %1712 = vmatpush2.bf16.msra.mxu0 0
  %1713 = vmatprep.subr.bf16.mxu0 0
  %1714 = vmatpush2.bf16.msra.mxu0 0
  %1715 = vmatprep.subr.bf16.mxu0 0
  %1716 = vmatpush2.bf16.msra.mxu0 0
  %1717 = vmatprep.subr.bf16.mxu0 0
  %1718 = vmatpush2.bf16.msra.mxu0 0
  %1719 = vmatprep.subr.bf16.mxu0 0
  %1720 = vmatpush2.bf16.msra.mxu0 0
  %1721 = vmatprep.subr.bf16.mxu0 0
  %1722 = vmatpush2.bf16.msra.mxu0 0
  %1723 = vmatprep.subr.bf16.mxu0 0
  %1724 = vmatpush2.bf16.msra.mxu0 0
  %1725 = vmatprep.subr.bf16.mxu0 0
  %1726 = vmatpush2.bf16.msra.mxu0 0
  %1727 = vmatprep.mubr.bf16.mxu0 0
  %1728 = vmatmul.mubr.bf16.gmra.mxu0 %v1619
  %v1729 = vpop.f32.mrf.mxu0
  %v1730 = vadd.f32 %v1645, %v1729
  %v1731 = vpop.f32.mrf.mxu0
  %v1732 = vpop.f32.mrf.mxu0
  %v1733 = vadd.f32 %v1645, %v1732
  %v1734 = vpop.f32.mrf.mxu0
  %1735 = vmatprep.mubr.bf16.mxu0 0
  %1736 = vmatmul.mubr.bf16.gmra.mxu0 %v1620
  %v1737 = vpop.f32.mrf.mxu0
  %v1738 = vadd.f32 %v1645, %v1737
  %v1739 = vpop.f32.mrf.mxu0
  %v1740 = vpop.f32.mrf.mxu0
  %v1741 = vadd.f32 %v1645, %v1740
  %v1742 = vpop.f32.mrf.mxu0
  %1743 = vmatprep.mubr.bf16.mxu0 0
  %1744 = vmatmul.mubr.bf16.gmra.mxu0 %v1621
  %v1745 = vpop.f32.mrf.mxu0
  %v1746 = vadd.f32 %v1645, %v1745
  %v1747 = vpop.f32.mrf.mxu0
  %v1748 = vpop.f32.mrf.mxu0
  %v1749 = vadd.f32 %v1645, %v1748
  %v1750 = vpop.f32.mrf.mxu0
  %1751 = vmatprep.mubr.bf16.mxu0 0
  %1752 = vmatmul.mubr.bf16.gmra.mxu0 %v1622
  %v1753 = vpop.f32.mrf.mxu0
  %v1754 = vadd.f32 %v1645, %v1753
  %v1755 = vpop.f32.mrf.mxu0
  %v1756 = vpop.f32.mrf.mxu0
  %v1757 = vadd.f32 %v1645, %v1756
  %v1758 = vpop.f32.mrf.mxu0
  %1759 = vmatprep.mubr.bf16.mxu0 0
  %1760 = vmatmul.mubr.bf16.gmra.mxu0 %v1623
  %v1761 = vpop.f32.mrf.mxu0
  %v1762 = vadd.f32 %v1645, %v1761
  %v1763 = vpop.f32.mrf.mxu0
  %v1764 = vpop.f32.mrf.mxu0
  %v1765 = vpop.f32.mrf.mxu0
  %1766 = vdwg.mxu0
  %1767 = vst [vmem:[%s6] sm:$0xff] %v1730
  %1768 = vst [vmem:[%s6 + $0x8] sm:$0xff] %v1733
  %1769 = vst [vmem:[%s6 + $0x10] sm:$0xff] %v1738
  %1770 = vst [vmem:[%s6 + $0x18] sm:$0xff] %v1741
  %1771 = vst [vmem:[%s6 + $0x20] sm:$0xff] %v1746
  %1772 = vst [vmem:[%s6 + $0x28] sm:$0xff] %v1749
  %1773 = vst [vmem:[%s6 + $0x30] sm:$0xff] %v1754
  %1774 = vst [vmem:[%s6 + $0x38] sm:$0xff] %v1757
  %1775 = vst [vmem:[%s6 + $0x40] sm:$0xff] %v1762
  // Predicated region
  $region26: #{decoder_rnn_forward.1} parent=0 // pred_check
    _
  $region27: #{decoder_rnn_forward.1} parent=0 // pred_check_branch
    %1777 = sbr.rel (0) target = $region29
  $region28: #{decoder_rnn_forward.1} parent=0 // pred_region
    _
  $region29: #{decoder_rnn_forward.1} parent=0 // pred_fallthru
    _
  // Predicated region
  $region30: #{decoder_rnn_forward.1} parent=0 // pred_check
    _
  $region31: #{decoder_rnn_forward.1} parent=0 // pred_check_branch
    %1779 = sbr.rel (0) target = $region33
  $region32: #{decoder_rnn_forward.1} parent=0 // pred_region
    _
  $region33: #{decoder_rnn_forward.1} parent=0 // pred_fallthru
    _

</llo_original>
